<compile_context>
chip_gen: v5e
topology: v5e:2x2
jax: 0.10.0
libtpu: 0.0.40
codegen_flags: <defaults>
</compile_context>

<pallas_src>
import functools

import numpy as np
import jax
import jax.numpy as jnp
from jax.experimental import pallas as pl
from jax.experimental.pallas import tpu as pltpu


@functools.lru_cache(maxsize=None)
def _centered_dft_matrix(n):
    """Dc such that Dc @ z == fftshift(fft(ifftshift(z), norm='ortho')). NumPy, cached."""
    k = np.arange(n)
    D = np.exp(-2j * np.pi * np.outer(k, k) / n) / np.sqrt(n)
    q = np.fft.fftshift(np.arange(n))
    Dc = D[q][:, q]
    return np.asarray(Dc.real, np.float32), np.asarray(Dc.imag, np.float32)


def _vmem_capacity_bytes():
    """Actual per-core VMEM capacity; conservative 64 MiB fallback (v7x) if unqueryable."""
    try:
        cap = getattr(pltpu.get_tpu_info(), "vmem_capacity_bytes", None)
        if cap:
            return int(cap)
    except Exception:
        pass
    return 64 << 20


def _step_vmem_bytes(ct, H, W, cdt_size, n_scratch):
    io = 4 * (2 * 2 * H * W            # x real/imag blocks, double-buffered
              + 2 * 2 * ct * H * W     # csm real/imag blocks, double-buffered
              + 2 * 2 * ct * H * W)    # output real/imag blocks, double-buffered
    const = cdt_size * 2 * (H * H + W * W)        # DFT constants, single-buffered
    scratch = n_scratch * cdt_size * ct * H * W
    return io + const + scratch


def _choose_coil_tile(C, H, W, cdt_size, n_scratch, budget):
    best = 1
    for d in range(1, C + 1):
        if C % d:
            continue
        if d > 8:                       # keep static stage-1 unroll / live set bounded
            break
        if d != C and (d * H) % 8 != 0:
            continue                    # non-full second-minor block dim must be 8-aligned
        if _step_vmem_bytes(d, H, W, cdt_size, n_scratch) <= budget:
            best = d
    return best


def _const_spec(shape):
    """Single-buffered BlockSpec for a grid-invariant constant operand."""
    index_map = lambda b, ct: (0, 0)
    try:
        return pl.BlockSpec(shape, index_map, pipeline_mode=pl.Buffered(1))
    except (TypeError, AttributeError):  # older jax: fall back to default double-buffering
        return pl.BlockSpec(shape, index_map)


def _forward_kernel(xr_ref, xi_ref, cr_ref, ci_ref,
                    dhr_ref, dhi_ref, dwtr_ref, dwti_ref,
                    yr_ref, yi_ref, *scratch, use_gauss):
    H = dhr_ref.shape[0]
    Ct = cr_ref.shape[1] // H
    cdt = dhr_ref.dtype                  # matmul compute dtype (bf16 default, f32 optional)

    if use_gauss:
        tr_scr, ti_scr, ts_scr = scratch
    else:
        tr_scr, ti_scr = scratch

    dot = lambda a, b: jnp.dot(a, b, preferred_element_type=jnp.float32)

    xr = xr_ref[0]                       # (H, W) image, read once per grid step
    xi = xi_ref[0]
    dhr = dhr_ref[...]                   # centered DFT over H (real / imag)
    dhi = dhi_ref[...]
    dhs = (dhr + dhi) if use_gauss else None

    # ---- Stage 1: per-coil SENS expansion fused with the H-direction DFT ----
    for c in range(Ct):
        rows = pl.ds(c * H, H)
        csr = cr_ref[0, rows, :]
        csi = ci_ref[0, rows, :]
        # complex_mul(x, csm) on the VPU, in f32
        zr = xr * csr - xi * csi
        zi = xr * csi + xi * csr
        zr_c = zr.astype(cdt)
        zi_c = zi.astype(cdt)
        if use_gauss:
            # Gauss 3-mult (f32 mode only; avoids cancellation on top of bf16 rounding)
            t1 = dot(dhr, zr_c)
            t2 = dot(dhi, zi_c)
            t3 = dot(dhs, (zr + zi).astype(cdt))
            tr = t1 - t2
            ti = t3 - t1 - t2
            ts_scr[rows, :] = (tr + ti).astype(cdt)
        else:
            # classical 4-mult complex matmul (bf16 operands, f32 accumulate)
            tr = dot(dhr, zr_c) - dot(dhi, zi_c)
            ti = dot(dhr, zi_c) + dot(dhi, zr_c)
        tr_scr[rows, :] = tr.astype(cdt)
        ti_scr[rows, :] = ti.astype(cdt)

    # ---- Stage 2: W-direction DFT fused over the whole coil tile (M = Ct*H) ----
    tr = tr_scr[...]
    ti = ti_scr[...]
    dwtr = dwtr_ref[...]                 # (centered DFT over W)^T (real / imag)
    dwti = dwti_ref[...]
    if use_gauss:
        dwts = dwtr + dwti
        s1 = dot(tr, dwtr)
        s2 = dot(ti, dwti)
        s3 = dot(ts_scr[...], dwts)
        yr_ref[0] = (s1 - s2).astype(yr_ref.dtype)
        yi_ref[0] = (s3 - s1 - s2).astype(yi_ref.dtype)
    else:
        yr_ref[0] = (dot(tr, dwtr) - dot(ti, dwti)).astype(yr_ref.dtype)
        yi_ref[0] = (dot(tr, dwti) + dot(ti, dwtr)).astype(yi_ref.dtype)


def _forward_planar(xr, xi, cr, ci, *, compute_dtype="bfloat16"):
    """Core entry: planar real/imag, coil-flattened.

    xr, xi: (B, H, W) f32.  cr, ci: (B, C*H, W) f32.  Returns (yr, yi): (B, C*H, W) f32.
    Use this directly (jitted as `forward_model_planar`) to avoid the packed<->planar
    HBM round trips of the `forward_model` wrapper.
    """
    B, H, W = xr.shape
    C = cr.shape[1] // H

    cdt = jnp.dtype(compute_dtype)
    use_gauss = (cdt == jnp.dtype(jnp.float32))
    n_mul = 3 if use_gauss else 4
    n_scratch = 3 if use_gauss else 2

    dhr_np, dhi_np = _centered_dft_matrix(H)
    dwr_np, dwi_np = _centered_dft_matrix(W)
    dhr = jnp.asarray(dhr_np, cdt)
    dhi = jnp.asarray(dhi_np, cdt)
    dwtr = jnp.asarray(dwr_np.T, cdt)
    dwti = jnp.asarray(dwi_np.T, cdt)

    cap = _vmem_capacity_bytes()
    headroom = 8 << 20                                   # Mosaic internal scratch + slack
    Ct = _choose_coil_tile(C, H, W, cdt.itemsize, n_scratch, cap - headroom)
    footprint = _step_vmem_bytes(Ct, H, W, cdt.itemsize, n_scratch)
    vmem_limit = int(min(cap, max(footprint + headroom, 32 << 20)))

    cost = pl.CostEstimate(
        flops=int(2 * n_mul * B * C * H * W * (H + W)),
        transcendentals=0,
        bytes_accessed=int(4 * B * H * W * (2 + 4 * C) + 2 * cdt.itemsize * (H * H + W * W)),
    )

    kernel = functools.partial(_forward_kernel, use_gauss=use_gauss)

    yr, yi = pl.pallas_call(
        kernel,
        out_shape=(jax.ShapeDtypeStruct((B, C * H, W), jnp.float32),
                   jax.ShapeDtypeStruct((B, C * H, W), jnp.float32)),
        grid_spec=pltpu.PrefetchScalarGridSpec(
            num_scalar_prefetch=0,
            grid=(B, C // Ct),
            in_specs=[
                pl.BlockSpec((1, H, W), lambda b, ct: (b, 0, 0)),         # xr
                pl.BlockSpec((1, H, W), lambda b, ct: (b, 0, 0)),         # xi
                pl.BlockSpec((1, Ct * H, W), lambda b, ct: (b, ct, 0)),   # csm real (coil tile)
                pl.BlockSpec((1, Ct * H, W), lambda b, ct: (b, ct, 0)),   # csm imag (coil tile)
                _const_spec((H, H)),                                      # Dh real
                _const_spec((H, H)),                                      # Dh imag
                _const_spec((W, W)),                                      # Dw^T real
                _const_spec((W, W)),                                      # Dw^T imag
            ],
            out_specs=[
                pl.BlockSpec((1, Ct * H, W), lambda b, ct: (b, ct, 0)),
                pl.BlockSpec((1, Ct * H, W), lambda b, ct: (b, ct, 0)),
            ],
            scratch_shapes=[pltpu.VMEM((Ct * H, W), cdt) for _ in range(n_scratch)],
        ),
        compiler_params=pltpu.CompilerParams(
            dimension_semantics=("parallel", "parallel"),
            vmem_limit_bytes=vmem_limit),
        cost_estimate=cost,
    )(xr, xi, cr, ci, dhr, dhi, dwtr, dwti)
    return yr, yi


forward_model_planar = jax.jit(_forward_planar, static_argnames=("compute_dtype",))


@functools.partial(jax.jit, static_argnames=("compute_dtype",))
def forward_model(x, csm, mask=None, *, compute_dtype="bfloat16"):
    """ForwardModel.forward(x, csm, mask) with the packed fastMRI (..., 2) layout.

    `mask` is accepted for API parity only — the reference forward never applies it,
    so the returned k-space is NOT masked.
    This wrapper pays HBM (de)interleave passes on csm and the output; callers that
    already hold planar real/imag data (e.g. fixed csm across recon iterations) should
    use `forward_model_planar` instead.
    """
    B, H, W, _ = x.shape
    _, C, _, _, _ = csm.shape
    xr, xi = x[..., 0], x[..., 1]
    cr = csm[..., 0].reshape(B, C * H, W)
    ci = csm[..., 1].reshape(B, C * H, W)
    yr, yi = _forward_planar(xr, xi, cr, ci, compute_dtype=compute_dtype)
    return jnp.stack([yr, yi], axis=-1).reshape(B, C, H, W, 2)


def _reference(x, csm):
    """Pure-JAX reference: complex_mul followed by fft2c (ortho)."""
    xc = x[..., 0] + 1j * x[..., 1]          # (B, H, W)
    cc = csm[..., 0] + 1j * csm[..., 1]      # (B, C, H, W)
    z = xc[:, None, :, :] * cc               # SENS expansion
    z = jnp.fft.ifftshift(z, axes=(-2, -1))
    z = jnp.fft.fftn(z, axes=(-2, -1), norm='ortho')
    z = jnp.fft.fftshift(z, axes=(-2, -1))
    return jnp.stack([z.real, z.imag], axis=-1)


if __name__ == "__main__":
    B, C, H, W = 2, 4, 16, 16
    key = jax.random.PRNGKey(0)
    kx, kc, km = jax.random.split(key, 3)

    x = jax.random.normal(kx, (B, H, W, 2), dtype=jnp.float32)
    csm = jax.random.normal(kc, (B, C, H, W, 2), dtype=jnp.float32)
    mask = (jax.random.uniform(km, (1, 1, 1, W, 1)) > 0.5).astype(jnp.float32)

    ref = np.asarray(_reference(x, csm))

    # f32 path (Gauss 3-mult): tight tolerance.
    out_f32 = jax.block_until_ready(forward_model(x, csm, mask, compute_dtype="float32"))
    assert out_f32.shape == (B, C, H, W, 2)
    np.testing.assert_allclose(np.asarray(out_f32), ref, rtol=1e-4, atol=1e-4)

    # Default bf16 MXU path (classical 4-mult, f32 accumulation): looser tolerance,
    # limited only by bf16 operand rounding of the unitary DFT weights.
    out_bf16 = jax.block_until_ready(forward_model(x, csm, mask))
    assert out_bf16.shape == (B, C, H, W, 2)
    np.testing.assert_allclose(np.asarray(out_bf16), ref, rtol=5e-2, atol=1e-1)

    print("KERNEL_OK")
</pallas_src>

<mosaic_0001>
module attributes {stable_mosaic.version = 11 : i64} {
  func.func @_forward_kernel(%arg0: i32, %arg1: i32, %arg2: memref<1x16x16xf32, #tpu.memory_space<vmem>>, %arg3: memref<1x16x16xf32, #tpu.memory_space<vmem>>, %arg4: memref<1x64x16xf32, #tpu.memory_space<vmem>>, %arg5: memref<1x64x16xf32, #tpu.memory_space<vmem>>, %arg6: memref<16x16xf32, #tpu.memory_space<vmem>>, %arg7: memref<16x16xf32, #tpu.memory_space<vmem>>, %arg8: memref<16x16xf32, #tpu.memory_space<vmem>>, %arg9: memref<16x16xf32, #tpu.memory_space<vmem>>, %arg10: memref<1x64x16xf32, #tpu.memory_space<vmem>>, %arg11: memref<1x64x16xf32, #tpu.memory_space<vmem>>, %arg12: memref<64x16xf32, #tpu.memory_space<vmem>>, %arg13: memref<64x16xf32, #tpu.memory_space<vmem>>, %arg14: memref<64x16xf32, #tpu.memory_space<vmem>>) attributes {dimension_semantics = [#tpu.dimension_semantics<parallel>, #tpu.dimension_semantics<parallel>], iteration_bounds = array<i64: 2, 1>, scalar_prefetch = 0 : i64, scratch_operands = 3 : i64, tpu.core_type = #tpu.core_type<tc>, window_params = [{transform_indices = @transform_0, window_bounds = array<i64: 1, 16, 16>}, {transform_indices = @transform_1, window_bounds = array<i64: 1, 16, 16>}, {transform_indices = @transform_2, window_bounds = array<i64: 1, 64, 16>}, {transform_indices = @transform_3, window_bounds = array<i64: 1, 64, 16>}, {pipeline_mode = #tpu.pipeline_mode<synchronous>, transform_indices = @transform_4, window_bounds = array<i64: 16, 16>}, {pipeline_mode = #tpu.pipeline_mode<synchronous>, transform_indices = @transform_5, window_bounds = array<i64: 16, 16>}, {pipeline_mode = #tpu.pipeline_mode<synchronous>, transform_indices = @transform_6, window_bounds = array<i64: 16, 16>}, {pipeline_mode = #tpu.pipeline_mode<synchronous>, transform_indices = @transform_7, window_bounds = array<i64: 16, 16>}, {transform_indices = @transform_8, window_bounds = array<i64: 1, 64, 16>}, {transform_indices = @transform_9, window_bounds = array<i64: 1, 64, 16>}]} {
    %c0 = arith.constant 0 : index
    %c0_0 = arith.constant 0 : index
    %c0_1 = arith.constant 0 : index
    %0 = vector.load %arg2[%c0, %c0_0, %c0_1] : memref<1x16x16xf32, #tpu.memory_space<vmem>>, vector<1x16x16xf32>
    %1 = vector.shape_cast %0 : vector<1x16x16xf32> to vector<16x16xf32>
    %c0_2 = arith.constant 0 : index
    %c0_3 = arith.constant 0 : index
    %c0_4 = arith.constant 0 : index
    %2 = vector.load %arg3[%c0_2, %c0_3, %c0_4] : memref<1x16x16xf32, #tpu.memory_space<vmem>>, vector<1x16x16xf32>
    %3 = vector.shape_cast %2 : vector<1x16x16xf32> to vector<16x16xf32>
    %c0_5 = arith.constant 0 : index
    %c0_6 = arith.constant 0 : index
    %4 = vector.load %arg6[%c0_5, %c0_6] : memref<16x16xf32, #tpu.memory_space<vmem>>, vector<16x16xf32>
    %c0_7 = arith.constant 0 : index
    %c0_8 = arith.constant 0 : index
    %5 = vector.load %arg7[%c0_7, %c0_8] : memref<16x16xf32, #tpu.memory_space<vmem>>, vector<16x16xf32>
    %6 = arith.addf %4, %5 : vector<16x16xf32>
    %c0_9 = arith.constant 0 : index
    %c0_10 = arith.constant 0 : index
    %c0_11 = arith.constant 0 : index
    %7 = vector.load %arg4[%c0_9, %c0_10, %c0_11] : memref<1x64x16xf32, #tpu.memory_space<vmem>>, vector<1x16x16xf32>
    %8 = vector.shape_cast %7 : vector<1x16x16xf32> to vector<16x16xf32>
    %c0_12 = arith.constant 0 : index
    %c0_13 = arith.constant 0 : index
    %c0_14 = arith.constant 0 : index
    %9 = vector.load %arg5[%c0_12, %c0_13, %c0_14] : memref<1x64x16xf32, #tpu.memory_space<vmem>>, vector<1x16x16xf32>
    %10 = vector.shape_cast %9 : vector<1x16x16xf32> to vector<16x16xf32>
    %11 = arith.mulf %1, %8 : vector<16x16xf32>
    %12 = arith.mulf %3, %10 : vector<16x16xf32>
    %13 = arith.subf %11, %12 : vector<16x16xf32>
    %14 = arith.mulf %1, %10 : vector<16x16xf32>
    %15 = arith.mulf %3, %8 : vector<16x16xf32>
    %16 = arith.addf %14, %15 : vector<16x16xf32>
    %cst = arith.constant dense<0.000000e+00> : vector<16x16xf32>
    %17 = tpu.matmul %4, %13, %cst {dimension_numbers = #tpu.dot_dimension_numbers<[1], [0], [0], [1], [0, 0, 1, 1], [], []>} : vector<16x16xf32>, vector<16x16xf32>, vector<16x16xf32> -> vector<16x16xf32>
    %cst_15 = arith.constant dense<0.000000e+00> : vector<16x16xf32>
    %18 = tpu.matmul %5, %16, %cst_15 {dimension_numbers = #tpu.dot_dimension_numbers<[1], [0], [0], [1], [0, 0, 1, 1], [], []>} : vector<16x16xf32>, vector<16x16xf32>, vector<16x16xf32> -> vector<16x16xf32>
    %19 = arith.addf %13, %16 : vector<16x16xf32>
    %cst_16 = arith.constant dense<0.000000e+00> : vector<16x16xf32>
    %20 = tpu.matmul %6, %19, %cst_16 {dimension_numbers = #tpu.dot_dimension_numbers<[1], [0], [0], [1], [0, 0, 1, 1], [], []>} : vector<16x16xf32>, vector<16x16xf32>, vector<16x16xf32> -> vector<16x16xf32>
    %21 = arith.subf %17, %18 : vector<16x16xf32>
    %22 = arith.subf %20, %17 : vector<16x16xf32>
    %23 = arith.subf %22, %18 : vector<16x16xf32>
    %24 = arith.addf %21, %23 : vector<16x16xf32>
    %c0_17 = arith.constant 0 : index
    %c0_18 = arith.constant 0 : index
    %25 = vector.load %arg14[%c0_17, %c0_18] : memref<64x16xf32, #tpu.memory_space<vmem>>, vector<16x16xf32>
    tpu.vector_store %arg14[%c0_17, %c0_18], %24 {strides = array<i32>} : memref<64x16xf32, #tpu.memory_space<vmem>>, vector<16x16xf32>,
    %c0_19 = arith.constant 0 : index
    %c0_20 = arith.constant 0 : index
    %26 = vector.load %arg12[%c0_19, %c0_20] : memref<64x16xf32, #tpu.memory_space<vmem>>, vector<16x16xf32>
    tpu.vector_store %arg12[%c0_19, %c0_20], %21 {strides = array<i32>} : memref<64x16xf32, #tpu.memory_space<vmem>>, vector<16x16xf32>,
    %c0_21 = arith.constant 0 : index
    %c0_22 = arith.constant 0 : index
    %27 = vector.load %arg13[%c0_21, %c0_22] : memref<64x16xf32, #tpu.memory_space<vmem>>, vector<16x16xf32>
    tpu.vector_store %arg13[%c0_21, %c0_22], %23 {strides = array<i32>} : memref<64x16xf32, #tpu.memory_space<vmem>>, vector<16x16xf32>,
    %c0_23 = arith.constant 0 : index
    %c16 = arith.constant 16 : index
    %c0_24 = arith.constant 0 : index
    %28 = vector.load %arg4[%c0_23, %c16, %c0_24] : memref<1x64x16xf32, #tpu.memory_space<vmem>>, vector<1x16x16xf32>
    %29 = vector.shape_cast %28 : vector<1x16x16xf32> to vector<16x16xf32>
    %c0_25 = arith.constant 0 : index
    %c16_26 = arith.constant 16 : index
    %c0_27 = arith.constant 0 : index
    %30 = vector.load %arg5[%c0_25, %c16_26, %c0_27] : memref<1x64x16xf32, #tpu.memory_space<vmem>>, vector<1x16x16xf32>
    %31 = vector.shape_cast %30 : vector<1x16x16xf32> to vector<16x16xf32>
    %32 = arith.mulf %1, %29 : vector<16x16xf32>
    %33 = arith.mulf %3, %31 : vector<16x16xf32>
    %34 = arith.subf %32, %33 : vector<16x16xf32>
    %35 = arith.mulf %1, %31 : vector<16x16xf32>
    %36 = arith.mulf %3, %29 : vector<16x16xf32>
    %37 = arith.addf %35, %36 : vector<16x16xf32>
    %cst_28 = arith.constant dense<0.000000e+00> : vector<16x16xf32>
    %38 = tpu.matmul %4, %34, %cst_28 {dimension_numbers = #tpu.dot_dimension_numbers<[1], [0], [0], [1], [0, 0, 1, 1], [], []>} : vector<16x16xf32>, vector<16x16xf32>, vector<16x16xf32> -> vector<16x16xf32>
    %cst_29 = arith.constant dense<0.000000e+00> : vector<16x16xf32>
    %39 = tpu.matmul %5, %37, %cst_29 {dimension_numbers = #tpu.dot_dimension_numbers<[1], [0], [0], [1], [0, 0, 1, 1], [], []>} : vector<16x16xf32>, vector<16x16xf32>, vector<16x16xf32> -> vector<16x16xf32>
    %40 = arith.addf %34, %37 : vector<16x16xf32>
    %cst_30 = arith.constant dense<0.000000e+00> : vector<16x16xf32>
    %41 = tpu.matmul %6, %40, %cst_30 {dimension_numbers = #tpu.dot_dimension_numbers<[1], [0], [0], [1], [0, 0, 1, 1], [], []>} : vector<16x16xf32>, vector<16x16xf32>, vector<16x16xf32> -> vector<16x16xf32>
    %42 = arith.subf %38, %39 : vector<16x16xf32>
    %43 = arith.subf %41, %38 : vector<16x16xf32>
    %44 = arith.subf %43, %39 : vector<16x16xf32>
    %45 = arith.addf %42, %44 : vector<16x16xf32>
    %c16_31 = arith.constant 16 : index
    %c0_32 = arith.constant 0 : index
    %46 = vector.load %arg14[%c16_31, %c0_32] : memref<64x16xf32, #tpu.memory_space<vmem>>, vector<16x16xf32>
    tpu.vector_store %arg14[%c16_31, %c0_32], %45 {strides = array<i32>} : memref<64x16xf32, #tpu.memory_space<vmem>>, vector<16x16xf32>,
    %c16_33 = arith.constant 16 : index
    %c0_34 = arith.constant 0 : index
    %47 = vector.load %arg12[%c16_33, %c0_34] : memref<64x16xf32, #tpu.memory_space<vmem>>, vector<16x16xf32>
    tpu.vector_store %arg12[%c16_33, %c0_34], %42 {strides = array<i32>} : memref<64x16xf32, #tpu.memory_space<vmem>>, vector<16x16xf32>,
    %c16_35 = arith.constant 16 : index
    %c0_36 = arith.constant 0 : index
    %48 = vector.load %arg13[%c16_35, %c0_36] : memref<64x16xf32, #tpu.memory_space<vmem>>, vector<16x16xf32>
    tpu.vector_store %arg13[%c16_35, %c0_36], %44 {strides = array<i32>} : memref<64x16xf32, #tpu.memory_space<vmem>>, vector<16x16xf32>,
    %c0_37 = arith.constant 0 : index
    %c32 = arith.constant 32 : index
    %c0_38 = arith.constant 0 : index
    %49 = vector.load %arg4[%c0_37, %c32, %c0_38] : memref<1x64x16xf32, #tpu.memory_space<vmem>>, vector<1x16x16xf32>
    %50 = vector.shape_cast %49 : vector<1x16x16xf32> to vector<16x16xf32>
    %c0_39 = arith.constant 0 : index
    %c32_40 = arith.constant 32 : index
    %c0_41 = arith.constant 0 : index
    %51 = vector.load %arg5[%c0_39, %c32_40, %c0_41] : memref<1x64x16xf32, #tpu.memory_space<vmem>>, vector<1x16x16xf32>
    %52 = vector.shape_cast %51 : vector<1x16x16xf32> to vector<16x16xf32>
    %53 = arith.mulf %1, %50 : vector<16x16xf32>
    %54 = arith.mulf %3, %52 : vector<16x16xf32>
    %55 = arith.subf %53, %54 : vector<16x16xf32>
    %56 = arith.mulf %1, %52 : vector<16x16xf32>
    %57 = arith.mulf %3, %50 : vector<16x16xf32>
    %58 = arith.addf %56, %57 : vector<16x16xf32>
    %cst_42 = arith.constant dense<0.000000e+00> : vector<16x16xf32>
    %59 = tpu.matmul %4, %55, %cst_42 {dimension_numbers = #tpu.dot_dimension_numbers<[1], [0], [0], [1], [0, 0, 1, 1], [], []>} : vector<16x16xf32>, vector<16x16xf32>, vector<16x16xf32> -> vector<16x16xf32>
    %cst_43 = arith.constant dense<0.000000e+00> : vector<16x16xf32>
    %60 = tpu.matmul %5, %58, %cst_43 {dimension_numbers = #tpu.dot_dimension_numbers<[1], [0], [0], [1], [0, 0, 1, 1], [], []>} : vector<16x16xf32>, vector<16x16xf32>, vector<16x16xf32> -> vector<16x16xf32>
    %61 = arith.addf %55, %58 : vector<16x16xf32>
    %cst_44 = arith.constant dense<0.000000e+00> : vector<16x16xf32>
    %62 = tpu.matmul %6, %61, %cst_44 {dimension_numbers = #tpu.dot_dimension_numbers<[1], [0], [0], [1], [0, 0, 1, 1], [], []>} : vector<16x16xf32>, vector<16x16xf32>, vector<16x16xf32> -> vector<16x16xf32>
    %63 = arith.subf %59, %60 : vector<16x16xf32>
    %64 = arith.subf %62, %59 : vector<16x16xf32>
    %65 = arith.subf %64, %60 : vector<16x16xf32>
    %66 = arith.addf %63, %65 : vector<16x16xf32>
    %c32_45 = arith.constant 32 : index
    %c0_46 = arith.constant 0 : index
    %67 = vector.load %arg14[%c32_45, %c0_46] : memref<64x16xf32, #tpu.memory_space<vmem>>, vector<16x16xf32>
    tpu.vector_store %arg14[%c32_45, %c0_46], %66 {strides = array<i32>} : memref<64x16xf32, #tpu.memory_space<vmem>>, vector<16x16xf32>,
    %c32_47 = arith.constant 32 : index
    %c0_48 = arith.constant 0 : index
    %68 = vector.load %arg12[%c32_47, %c0_48] : memref<64x16xf32, #tpu.memory_space<vmem>>, vector<16x16xf32>
    tpu.vector_store %arg12[%c32_47, %c0_48], %63 {strides = array<i32>} : memref<64x16xf32, #tpu.memory_space<vmem>>, vector<16x16xf32>,
    %c32_49 = arith.constant 32 : index
    %c0_50 = arith.constant 0 : index
    %69 = vector.load %arg13[%c32_49, %c0_50] : memref<64x16xf32, #tpu.memory_space<vmem>>, vector<16x16xf32>
    tpu.vector_store %arg13[%c32_49, %c0_50], %65 {strides = array<i32>} : memref<64x16xf32, #tpu.memory_space<vmem>>, vector<16x16xf32>,
    %c0_51 = arith.constant 0 : index
    %c48 = arith.constant 48 : index
    %c0_52 = arith.constant 0 : index
    %70 = vector.load %arg4[%c0_51, %c48, %c0_52] : memref<1x64x16xf32, #tpu.memory_space<vmem>>, vector<1x16x16xf32>
    %71 = vector.shape_cast %70 : vector<1x16x16xf32> to vector<16x16xf32>
    %c0_53 = arith.constant 0 : index
    %c48_54 = arith.constant 48 : index
    %c0_55 = arith.constant 0 : index
    %72 = vector.load %arg5[%c0_53, %c48_54, %c0_55] : memref<1x64x16xf32, #tpu.memory_space<vmem>>, vector<1x16x16xf32>
    %73 = vector.shape_cast %72 : vector<1x16x16xf32> to vector<16x16xf32>
    %74 = arith.mulf %1, %71 : vector<16x16xf32>
    %75 = arith.mulf %3, %73 : vector<16x16xf32>
    %76 = arith.subf %74, %75 : vector<16x16xf32>
    %77 = arith.mulf %1, %73 : vector<16x16xf32>
    %78 = arith.mulf %3, %71 : vector<16x16xf32>
    %79 = arith.addf %77, %78 : vector<16x16xf32>
    %cst_56 = arith.constant dense<0.000000e+00> : vector<16x16xf32>
    %80 = tpu.matmul %4, %76, %cst_56 {dimension_numbers = #tpu.dot_dimension_numbers<[1], [0], [0], [1], [0, 0, 1, 1], [], []>} : vector<16x16xf32>, vector<16x16xf32>, vector<16x16xf32> -> vector<16x16xf32>
    %cst_57 = arith.constant dense<0.000000e+00> : vector<16x16xf32>
    %81 = tpu.matmul %5, %79, %cst_57 {dimension_numbers = #tpu.dot_dimension_numbers<[1], [0], [0], [1], [0, 0, 1, 1], [], []>} : vector<16x16xf32>, vector<16x16xf32>, vector<16x16xf32> -> vector<16x16xf32>
    %82 = arith.addf %76, %79 : vector<16x16xf32>
    %cst_58 = arith.constant dense<0.000000e+00> : vector<16x16xf32>
    %83 = tpu.matmul %6, %82, %cst_58 {dimension_numbers = #tpu.dot_dimension_numbers<[1], [0], [0], [1], [0, 0, 1, 1], [], []>} : vector<16x16xf32>, vector<16x16xf32>, vector<16x16xf32> -> vector<16x16xf32>
    %84 = arith.subf %80, %81 : vector<16x16xf32>
    %85 = arith.subf %83, %80 : vector<16x16xf32>
    %86 = arith.subf %85, %81 : vector<16x16xf32>
    %87 = arith.addf %84, %86 : vector<16x16xf32>
    %c48_59 = arith.constant 48 : index
    %c0_60 = arith.constant 0 : index
    %88 = vector.load %arg14[%c48_59, %c0_60] : memref<64x16xf32, #tpu.memory_space<vmem>>, vector<16x16xf32>
    tpu.vector_store %arg14[%c48_59, %c0_60], %87 {strides = array<i32>} : memref<64x16xf32, #tpu.memory_space<vmem>>, vector<16x16xf32>,
    %c48_61 = arith.constant 48 : index
    %c0_62 = arith.constant 0 : index
    %89 = vector.load %arg12[%c48_61, %c0_62] : memref<64x16xf32, #tpu.memory_space<vmem>>, vector<16x16xf32>
    tpu.vector_store %arg12[%c48_61, %c0_62], %84 {strides = array<i32>} : memref<64x16xf32, #tpu.memory_space<vmem>>, vector<16x16xf32>,
    %c48_63 = arith.constant 48 : index
    %c0_64 = arith.constant 0 : index
    %90 = vector.load %arg13[%c48_63, %c0_64] : memref<64x16xf32, #tpu.memory_space<vmem>>, vector<16x16xf32>
    tpu.vector_store %arg13[%c48_63, %c0_64], %86 {strides = array<i32>} : memref<64x16xf32, #tpu.memory_space<vmem>>, vector<16x16xf32>,
    %c0_65 = arith.constant 0 : index
    %c0_66 = arith.constant 0 : index
    %91 = vector.load %arg12[%c0_65, %c0_66] : memref<64x16xf32, #tpu.memory_space<vmem>>, vector<64x16xf32>
    %c0_67 = arith.constant 0 : index
    %c0_68 = arith.constant 0 : index
    %92 = vector.load %arg13[%c0_67, %c0_68] : memref<64x16xf32, #tpu.memory_space<vmem>>, vector<64x16xf32>
    %c0_69 = arith.constant 0 : index
    %c0_70 = arith.constant 0 : index
    %93 = vector.load %arg8[%c0_69, %c0_70] : memref<16x16xf32, #tpu.memory_space<vmem>>, vector<16x16xf32>
    %c0_71 = arith.constant 0 : index
    %c0_72 = arith.constant 0 : index
    %94 = vector.load %arg9[%c0_71, %c0_72] : memref<16x16xf32, #tpu.memory_space<vmem>>, vector<16x16xf32>
    %95 = arith.addf %93, %94 : vector<16x16xf32>
    %cst_73 = arith.constant dense<0.000000e+00> : vector<64x16xf32>
    %96 = tpu.matmul %91, %93, %cst_73 {dimension_numbers = #tpu.dot_dimension_numbers<[1], [0], [0], [1], [0, 0, 1, 1], [], []>} : vector<64x16xf32>, vector<16x16xf32>, vector<64x16xf32> -> vector<64x16xf32>
    %cst_74 = arith.constant dense<0.000000e+00> : vector<64x16xf32>
    %97 = tpu.matmul %92, %94, %cst_74 {dimension_numbers = #tpu.dot_dimension_numbers<[1], [0], [0], [1], [0, 0, 1, 1], [], []>} : vector<64x16xf32>, vector<16x16xf32>, vector<64x16xf32> -> vector<64x16xf32>
    %c0_75 = arith.constant 0 : index
    %c0_76 = arith.constant 0 : index
    %98 = vector.load %arg14[%c0_75, %c0_76] : memref<64x16xf32, #tpu.memory_space<vmem>>, vector<64x16xf32>
    %cst_77 = arith.constant dense<0.000000e+00> : vector<64x16xf32>
    %99 = tpu.matmul %98, %95, %cst_77 {dimension_numbers = #tpu.dot_dimension_numbers<[1], [0], [0], [1], [0, 0, 1, 1], [], []>} : vector<64x16xf32>, vector<16x16xf32>, vector<64x16xf32> -> vector<64x16xf32>
    %100 = arith.subf %96, %97 : vector<64x16xf32>
    %c0_78 = arith.constant 0 : index
    %c0_79 = arith.constant 0 : index
    %c0_80 = arith.constant 0 : index
    %101 = vector.load %arg10[%c0_78, %c0_79, %c0_80] : memref<1x64x16xf32, #tpu.memory_space<vmem>>, vector<1x64x16xf32>
    %102 = vector.shape_cast %101 : vector<1x64x16xf32> to vector<64x16xf32>
    %103 = vector.shape_cast %100 : vector<64x16xf32> to vector<1x64x16xf32>
    tpu.vector_store %arg10[%c0_78, %c0_79, %c0_80], %103 {strides = array<i32>} : memref<1x64x16xf32, #tpu.memory_space<vmem>>, vector<1x64x16xf32>,
    %104 = arith.subf %99, %96 : vector<64x16xf32>
    %105 = arith.subf %104, %97 : vector<64x16xf32>
    %c0_81 = arith.constant 0 : index
    %c0_82 = arith.constant 0 : index
    %c0_83 = arith.constant 0 : index
    %106 = vector.load %arg11[%c0_81, %c0_82, %c0_83] : memref<1x64x16xf32, #tpu.memory_space<vmem>>, vector<1x64x16xf32>
    %107 = vector.shape_cast %106 : vector<1x64x16xf32> to vector<64x16xf32>
    %108 = vector.shape_cast %105 : vector<64x16xf32> to vector<1x64x16xf32>
    tpu.vector_store %arg11[%c0_81, %c0_82, %c0_83], %108 {strides = array<i32>} : memref<1x64x16xf32, #tpu.memory_space<vmem>>, vector<1x64x16xf32>,
    return
  }
  func.func @transform_0(%arg0: i32, %arg1: i32) -> (i32, i32, i32) {
    %c0_i32 = arith.constant 0 : i32
    %c0_i32_0 = arith.constant 0 : i32
    %c0_i32_1 = arith.constant 0 : i32
    return %arg0, %c0_i32, %c0_i32_0 : i32, i32, i32
  }
  func.func @transform_1(%arg0: i32, %arg1: i32) -> (i32, i32, i32) {
    %c0_i32 = arith.constant 0 : i32
    %c0_i32_0 = arith.constant 0 : i32
    %c0_i32_1 = arith.constant 0 : i32
    return %arg0, %c0_i32, %c0_i32_0 : i32, i32, i32
  }
  func.func @transform_2(%arg0: i32, %arg1: i32) -> (i32, i32, i32) {
    %c0_i32 = arith.constant 0 : i32
    %c0_i32_0 = arith.constant 0 : i32
    return %arg0, %arg1, %c0_i32 : i32, i32, i32
  }
  func.func @transform_3(%arg0: i32, %arg1: i32) -> (i32, i32, i32) {
    %c0_i32 = arith.constant 0 : i32
    %c0_i32_0 = arith.constant 0 : i32
    return %arg0, %arg1, %c0_i32 : i32, i32, i32
  }
  func.func @transform_4(%arg0: i32, %arg1: i32) -> (i32, i32) {
    %c0_i32 = arith.constant 0 : i32
    %c0_i32_0 = arith.constant 0 : i32
    %c0_i32_1 = arith.constant 0 : i32
    return %c0_i32, %c0_i32_0 : i32, i32
  }
  func.func @transform_5(%arg0: i32, %arg1: i32) -> (i32, i32) {
    %c0_i32 = arith.constant 0 : i32
    %c0_i32_0 = arith.constant 0 : i32
    %c0_i32_1 = arith.constant 0 : i32
    return %c0_i32, %c0_i32_0 : i32, i32
  }
  func.func @transform_6(%arg0: i32, %arg1: i32) -> (i32, i32) {
    %c0_i32 = arith.constant 0 : i32
    %c0_i32_0 = arith.constant 0 : i32
    %c0_i32_1 = arith.constant 0 : i32
    return %c0_i32, %c0_i32_0 : i32, i32
  }
  func.func @transform_7(%arg0: i32, %arg1: i32) -> (i32, i32) {
    %c0_i32 = arith.constant 0 : i32
    %c0_i32_0 = arith.constant 0 : i32
    %c0_i32_1 = arith.constant 0 : i32
    return %c0_i32, %c0_i32_0 : i32, i32
  }
  func.func @transform_8(%arg0: i32, %arg1: i32) -> (i32, i32, i32) {
    %c0_i32 = arith.constant 0 : i32
    %c0_i32_0 = arith.constant 0 : i32
    return %arg0, %arg1, %c0_i32 : i32, i32, i32
  }
  func.func @transform_9(%arg0: i32, %arg1: i32) -> (i32, i32, i32) {
    %c0_i32 = arith.constant 0 : i32
    %c0_i32_0 = arith.constant 0 : i32
    return %arg0, %arg1, %c0_i32 : i32, i32, i32
  }
}

</mosaic_0001>

<llo_original>
// kernel: forward_model.1
$region0: #{forward_model.1}
  #allocation0 [shape = 'u32[]', space=smem, size = 0x4, offset = 0x4, fixed_abs, tag = 'smem constant byte address 0x4 - core index']
  #allocation1 [shape = 'u32[72,128]{1,0:T(1,128)}', space=vmem, size = 0x9000, scoped, tag = 'internal scratch']
  #allocation2 [shape = 'f32[64,16]{1,0:T(8,128)}', space=vmem, size = 0x8000, scoped, tag = 'scratch operand']
  #allocation3 [shape = 'f32[64,16]{1,0:T(8,128)}', space=vmem, size = 0x8000, scoped, tag = 'scratch operand']
  #allocation4 [shape = 'f32[64,16]{1,0:T(8,128)}', space=vmem, size = 0x8000, scoped, tag = 'scratch operand']
  %s0 = inlined_call_operand.vmem [shape: f32[2,16,16], index: 0, kind: input, shape index: {}]
  %s1 = inlined_call_operand.vmem [shape: f32[2,16,16], index: 1, kind: input, shape index: {}]
  %s2 = inlined_call_operand.vmem [shape: f32[2,64,16], index: 2, kind: input, shape index: {}]
  %s3 = inlined_call_operand.vmem [shape: f32[2,64,16], index: 3, kind: input, shape index: {}]
  %s4 = inlined_call_operand.vmem [shape: f32[16,16], index: 4, kind: input, shape index: {}, may-alias: {4,6}]
  %s5 = inlined_call_operand.vmem [shape: f32[16,16], index: 5, kind: input, shape index: {}, may-alias: {5,7}]
  %s6 = inlined_call_operand.vmem [shape: f32[16,16], index: 6, kind: input, shape index: {}, may-alias: {4,6}]
  %s7 = inlined_call_operand.vmem [shape: f32[16,16], index: 7, kind: input, shape index: {}, may-alias: {5,7}]
  %s8 = inlined_call_operand.vmem [shape: f32[2,64,16], index: 8, kind: output, shape index: {0}]
  %s9 = inlined_call_operand.vmem [shape: f32[2,64,16], index: 9, kind: output, shape index: {1}]
  %10 = xla_tuple %s8, %s9
  %s11 = sld [smem:[#allocation0]]
  $region73: #{forward_model.1} parent=0
    _
  %s13 = ssub.s32 1, %s11
  %s14 = scalar_select 0, %s13, %s11
  loop: start=0, step=1, limit=4
  $region2: #{forward_model.1} parent=0 // loop_pre_header
    _
  $region3: #{forward_model.1} parent=0 // loop_header
    %s16 = sphi 0, %s20
    %p17 = scmp.ge.s32.totalorder %s16, 4
    %s23 = sphi 0, %s35
    %s24 = sphi 0, %s31
    %s25 = sphi 0, %s23
    %s26 = sphi 0, %s24
    %s27 = sphi 0, %s25
    %s28 = sphi 0, %s26
    %s38 = sphi 0, %s40
    %s41 = sphi 0, %s38
    %s42 = sphi 0, %s41
    %s58 = sphi 0, %s42
    %s64 = sphi 0, %s66
    %s67 = sphi 0, %s64
    %s68 = sphi 0, %s67
    %s84 = sphi 0, %s68
    %s92 = sphi 0, %s94
    %s95 = sphi 0, %s92
    %s96 = sphi 0, %s95
    %s112 = sphi 0, %s96
    %s120 = sphi 0, %s122
    %s123 = sphi 0, %s120
    %s124 = sphi 0, %s123
    %s140 = sphi 0, %s124
    %s144 = sphi 0, %s144
    %s146 = sphi 0, %s144
    %s147 = sphi 0, %s146
    %s161 = sphi 0, %s147
    %s165 = sphi 0, %s165
    %s167 = sphi 0, %s165
    %s168 = sphi 0, %s167
    %s182 = sphi 0, %s168
    %s186 = sphi 0, %s186
    %s188 = sphi 0, %s186
    %s189 = sphi 0, %s188
    %s203 = sphi 0, %s189
    %s207 = sphi 0, %s207
    %s209 = sphi 0, %s207
    %s210 = sphi 0, %s209
    %s224 = sphi 0, %s210
    %s232 = sphi 0, %s234
    %s235 = sphi 0, %s232
    %s236 = sphi 0, %s235
    %s252 = sphi 0, %s236
    %s260 = sphi 0, %s262
    %s263 = sphi 0, %s260
    %s264 = sphi 0, %s263
    %s280 = sphi 0, %s264
  $region4: #{forward_model.1} parent=0 // loop_header_branch
    %19 = sbr.rel (%p17) target = $region8
  $region5: #{forward_model.1} parent=0 // loop_body
    %s21 = ssub.s32 %s16, 1
    %s22 = ssub.s32 %s16, 2
    %s29 = sadd.s32 1, %s24
    %p30 = scmp.ge.s32.totalorder %s29, 1
    %s31 = scalar_select %p30, 0, %s29
    %s32 = sadd.s32 1, %s23
    %s33 = scalar_select %p30, %s32, %s23
    %p34 = scmp.ge.s32.totalorder %s33, 2
    %s35 = scalar_select %p34, 0, %s33
    %s36 = ssub.s32 %s23, %s35
    %p37 = scmp.eq.s32.totalorder %s36, 0
    %s39 = sadd.s32 %s38, 1
    %s40 = scalar_select %p37, %s38, %s39
    %p43 = pneg %p37
    %p44 = scmp.eq.s32.totalorder %s16, 1
    %p45 = por %p43, %p44
    %p46 = scmp.ne.s32.totalorder %s38, %s41
    %p47 = scmp.eq.s32.totalorder %s16, 0
    %p48 = por %p46, %p47
    %p49 = scmp.ne.s32.totalorder %s38, %s41
    %p50 = scmp.eq.s32.totalorder %s21, 1
    %p51 = por %p49, %p50
    %p52 = scmp.ne.s32.totalorder %s41, %s42
    %p53 = scmp.eq.s32.totalorder %s21, 0
    %p54 = por %p52, %p53
    %p55 = scmp.ne.s32.totalorder %s41, %s42
    %p56 = scmp.eq.s32.totalorder %s22, 1
    %p57 = por %p55, %p56
    %p59 = scmp.ne.s32.totalorder %s42, %s58
    %p60 = scmp.eq.s32.totalorder %s22, 0
    %p61 = por %p59, %p60
    %s62 = ssub.s32 %s23, %s35
    %p63 = scmp.eq.s32.totalorder %s62, 0
    %s65 = sadd.s32 %s64, 1
    %s66 = scalar_select %p63, %s64, %s65
    %p69 = pneg %p63
    %p70 = scmp.eq.s32.totalorder %s16, 1
    %p71 = por %p69, %p70
    %p72 = scmp.ne.s32.totalorder %s64, %s67
    %p73 = scmp.eq.s32.totalorder %s16, 0
    %p74 = por %p72, %p73
    %p75 = scmp.ne.s32.totalorder %s64, %s67
    %p76 = scmp.eq.s32.totalorder %s21, 1
    %p77 = por %p75, %p76
    %p78 = scmp.ne.s32.totalorder %s67, %s68
    %p79 = scmp.eq.s32.totalorder %s21, 0
    %p80 = por %p78, %p79
    %p81 = scmp.ne.s32.totalorder %s67, %s68
    %p82 = scmp.eq.s32.totalorder %s22, 1
    %p83 = por %p81, %p82
    %p85 = scmp.ne.s32.totalorder %s68, %s84
    %p86 = scmp.eq.s32.totalorder %s22, 0
    %p87 = por %p85, %p86
    %s88 = ssub.s32 %s23, %s35
    %s89 = ssub.s32 %s24, %s31
    %s90 = sor.u32 %s88, %s89
    %p91 = scmp.eq.s32.totalorder %s90, 0
    %s93 = sadd.s32 %s92, 1
    %s94 = scalar_select %p91, %s92, %s93
    %p97 = pneg %p91
    %p98 = scmp.eq.s32.totalorder %s16, 1
    %p99 = por %p97, %p98
    %p100 = scmp.ne.s32.totalorder %s92, %s95
    %p101 = scmp.eq.s32.totalorder %s16, 0
    %p102 = por %p100, %p101
    %p103 = scmp.ne.s32.totalorder %s92, %s95
    %p104 = scmp.eq.s32.totalorder %s21, 1
    %p105 = por %p103, %p104
    %p106 = scmp.ne.s32.totalorder %s95, %s96
    %p107 = scmp.eq.s32.totalorder %s21, 0
    %p108 = por %p106, %p107
    %p109 = scmp.ne.s32.totalorder %s95, %s96
    %p110 = scmp.eq.s32.totalorder %s22, 1
    %p111 = por %p109, %p110
    %p113 = scmp.ne.s32.totalorder %s96, %s112
    %p114 = scmp.eq.s32.totalorder %s22, 0
    %p115 = por %p113, %p114
    %s116 = ssub.s32 %s23, %s35
    %s117 = ssub.s32 %s24, %s31
    %s118 = sor.u32 %s116, %s117
    %p119 = scmp.eq.s32.totalorder %s118, 0
    %s121 = sadd.s32 %s120, 1
    %s122 = scalar_select %p119, %s120, %s121
    %p125 = pneg %p119
    %p126 = scmp.eq.s32.totalorder %s16, 1
    %p127 = por %p125, %p126
    %p128 = scmp.ne.s32.totalorder %s120, %s123
    %p129 = scmp.eq.s32.totalorder %s16, 0
    %p130 = por %p128, %p129
    %p131 = scmp.ne.s32.totalorder %s120, %s123
    %p132 = scmp.eq.s32.totalorder %s21, 1
    %p133 = por %p131, %p132
    %p134 = scmp.ne.s32.totalorder %s123, %s124
    %p135 = scmp.eq.s32.totalorder %s21, 0
    %p136 = por %p134, %p135
    %p137 = scmp.ne.s32.totalorder %s123, %s124
    %p138 = scmp.eq.s32.totalorder %s22, 1
    %p139 = por %p137, %p138
    %p141 = scmp.ne.s32.totalorder %s124, %s140
    %p142 = scmp.eq.s32.totalorder %s22, 0
    %p143 = por %p141, %p142
    %s145 = sadd.s32 %s144, 1
    %p148 = scmp.eq.s32.totalorder %s16, 1
    %p149 = scmp.ne.s32.totalorder %s144, %s146
    %p150 = scmp.eq.s32.totalorder %s16, 0
    %p151 = por %p149, %p150
    %p152 = scmp.ne.s32.totalorder %s144, %s146
    %p153 = scmp.eq.s32.totalorder %s21, 1
    %p154 = por %p152, %p153
    %p155 = scmp.ne.s32.totalorder %s146, %s147
    %p156 = scmp.eq.s32.totalorder %s21, 0
    %p157 = por %p155, %p156
    %p158 = scmp.ne.s32.totalorder %s146, %s147
    %p159 = scmp.eq.s32.totalorder %s22, 1
    %p160 = por %p158, %p159
    %p162 = scmp.ne.s32.totalorder %s147, %s161
    %p163 = scmp.eq.s32.totalorder %s22, 0
    %p164 = por %p162, %p163
    %s166 = sadd.s32 %s165, 1
    %p169 = scmp.eq.s32.totalorder %s16, 1
    %p170 = scmp.ne.s32.totalorder %s165, %s167
    %p171 = scmp.eq.s32.totalorder %s16, 0
    %p172 = por %p170, %p171
    %p173 = scmp.ne.s32.totalorder %s165, %s167
    %p174 = scmp.eq.s32.totalorder %s21, 1
    %p175 = por %p173, %p174
    %p176 = scmp.ne.s32.totalorder %s167, %s168
    %p177 = scmp.eq.s32.totalorder %s21, 0
    %p178 = por %p176, %p177
    %p179 = scmp.ne.s32.totalorder %s167, %s168
    %p180 = scmp.eq.s32.totalorder %s22, 1
    %p181 = por %p179, %p180
    %p183 = scmp.ne.s32.totalorder %s168, %s182
    %p184 = scmp.eq.s32.totalorder %s22, 0
    %p185 = por %p183, %p184
    %s187 = sadd.s32 %s186, 1
    %p190 = scmp.eq.s32.totalorder %s16, 1
    %p191 = scmp.ne.s32.totalorder %s186, %s188
    %p192 = scmp.eq.s32.totalorder %s16, 0
    %p193 = por %p191, %p192
    %p194 = scmp.ne.s32.totalorder %s186, %s188
    %p195 = scmp.eq.s32.totalorder %s21, 1
    %p196 = por %p194, %p195
    %p197 = scmp.ne.s32.totalorder %s188, %s189
    %p198 = scmp.eq.s32.totalorder %s21, 0
    %p199 = por %p197, %p198
    %p200 = scmp.ne.s32.totalorder %s188, %s189
    %p201 = scmp.eq.s32.totalorder %s22, 1
    %p202 = por %p200, %p201
    %p204 = scmp.ne.s32.totalorder %s189, %s203
    %p205 = scmp.eq.s32.totalorder %s22, 0
    %p206 = por %p204, %p205
    %s208 = sadd.s32 %s207, 1
    %p211 = scmp.eq.s32.totalorder %s16, 1
    %p212 = scmp.ne.s32.totalorder %s207, %s209
    %p213 = scmp.eq.s32.totalorder %s16, 0
    %p214 = por %p212, %p213
    %p215 = scmp.ne.s32.totalorder %s207, %s209
    %p216 = scmp.eq.s32.totalorder %s21, 1
    %p217 = por %p215, %p216
    %p218 = scmp.ne.s32.totalorder %s209, %s210
    %p219 = scmp.eq.s32.totalorder %s21, 0
    %p220 = por %p218, %p219
    %p221 = scmp.ne.s32.totalorder %s209, %s210
    %p222 = scmp.eq.s32.totalorder %s22, 1
    %p223 = por %p221, %p222
    %p225 = scmp.ne.s32.totalorder %s210, %s224
    %p226 = scmp.eq.s32.totalorder %s22, 0
    %p227 = por %p225, %p226
    %s228 = ssub.s32 %s23, %s35
    %s229 = ssub.s32 %s24, %s31
    %s230 = sor.u32 %s228, %s229
    %p231 = scmp.eq.s32.totalorder %s230, 0
    %s233 = sadd.s32 %s232, 1
    %s234 = scalar_select %p231, %s232, %s233
    %p237 = pneg %p231
    %p238 = scmp.eq.s32.totalorder %s16, 1
    %p239 = por %p237, %p238
    %p240 = scmp.ne.s32.totalorder %s232, %s235
    %p241 = scmp.eq.s32.totalorder %s16, 0
    %p242 = por %p240, %p241
    %p243 = scmp.ne.s32.totalorder %s232, %s235
    %p244 = scmp.eq.s32.totalorder %s21, 1
    %p245 = por %p243, %p244
    %p246 = scmp.ne.s32.totalorder %s235, %s236
    %p247 = scmp.eq.s32.totalorder %s21, 0
    %p248 = por %p246, %p247
    %p249 = scmp.ne.s32.totalorder %s235, %s236
    %p250 = scmp.eq.s32.totalorder %s22, 1
    %p251 = por %p249, %p250
    %p253 = scmp.ne.s32.totalorder %s236, %s252
    %p254 = scmp.eq.s32.totalorder %s22, 0
    %p255 = por %p253, %p254
    %s256 = ssub.s32 %s23, %s35
    %s257 = ssub.s32 %s24, %s31
    %s258 = sor.u32 %s256, %s257
    %p259 = scmp.eq.s32.totalorder %s258, 0
    %s261 = sadd.s32 %s260, 1
    %s262 = scalar_select %p259, %s260, %s261
    %p265 = pneg %p259
    %p266 = scmp.eq.s32.totalorder %s16, 1
    %p267 = por %p265, %p266
    %p268 = scmp.ne.s32.totalorder %s260, %s263
    %p269 = scmp.eq.s32.totalorder %s16, 0
    %p270 = por %p268, %p269
    %p271 = scmp.ne.s32.totalorder %s260, %s263
    %p272 = scmp.eq.s32.totalorder %s21, 1
    %p273 = por %p271, %p272
    %p274 = scmp.ne.s32.totalorder %s263, %s264
    %p275 = scmp.eq.s32.totalorder %s21, 0
    %p276 = por %p274, %p275
    %p277 = scmp.ne.s32.totalorder %s263, %s264
    %p278 = scmp.eq.s32.totalorder %s22, 1
    %p279 = por %p277, %p278
    %p281 = scmp.ne.s32.totalorder %s264, %s280
    %p282 = scmp.eq.s32.totalorder %s22, 0
    %p283 = por %p281, %p282
    %p284 = scmp.le.s32.totalorder 1, %s16
    %p285 = scmp.lt.s32.totalorder %s16, 3
    %p286 = pnand %p284, %p285
    %p287 = pneg %p286
    // Predicated region
    $region9: #{forward_model.1} parent=5 // pred_check
      _
    $region10: #{forward_model.1} parent=5 // pred_check_branch
      %289 = sbr.rel (%p286) target = $region12
    $region11: #{forward_model.1} parent=5 // pred_region
      %s290 = ssub.s32 %s16, 1
      // Predicated region
      $region13: #{forward_model.1} parent=11 // pred_check
        %p291 = pneg %p157
      $region14: #{forward_model.1} parent=11 // pred_check_branch
        %293 = sbr.rel (%p291) target = $region16
      $region15: #{forward_model.1} parent=11 // pred_region
        _
      $region16: #{forward_model.1} parent=11 // pred_fallthru
        _
      // Predicated region
      $region17: #{forward_model.1} parent=11 // pred_check
        %p294 = pneg %p178
      $region18: #{forward_model.1} parent=11 // pred_check_branch
        %296 = sbr.rel (%p294) target = $region20
      $region19: #{forward_model.1} parent=11 // pred_region
        _
      $region20: #{forward_model.1} parent=11 // pred_fallthru
        _
      // Predicated region
      $region21: #{forward_model.1} parent=11 // pred_check
        %p297 = pneg %p199
      $region22: #{forward_model.1} parent=11 // pred_check_branch
        %299 = sbr.rel (%p297) target = $region24
      $region23: #{forward_model.1} parent=11 // pred_region
        _
      $region24: #{forward_model.1} parent=11 // pred_fallthru
        _
      // Predicated region
      $region25: #{forward_model.1} parent=11 // pred_check
        %p300 = pneg %p220
      $region26: #{forward_model.1} parent=11 // pred_check_branch
        %302 = sbr.rel (%p300) target = $region28
      $region27: #{forward_model.1} parent=11 // pred_region
        _
      $region28: #{forward_model.1} parent=11 // pred_fallthru
        _
    $region12: #{forward_model.1} parent=5 // pred_fallthru
      _
    %p303 = scmp.lt.s32.totalorder %s16, 2
    // Predicated region
    $region29: #{forward_model.1} parent=5 // pred_check
      %p304 = pneg %p303
    $region30: #{forward_model.1} parent=5 // pred_check_branch
      %306 = sbr.rel (%p304) target = $region32
    $region31: #{forward_model.1} parent=5 // pred_region
      // Predicated region
      $region33: #{forward_model.1} parent=31 // pred_check
        %p307 = pneg %p48
      $region34: #{forward_model.1} parent=31 // pred_check_branch
        %309 = sbr.rel (%p307) target = $region36
      $region35: #{forward_model.1} parent=31 // pred_region
        %p310 = scmp.lt.s32.totalorder %s23, 1
        %s311 = scalar_select %p310, %s23, 1
        %s312 = smul.addr %s311, 2
        %s313 = smul.addr %s312, 8
        %s314 = scalar_lea.vmem %s0, %s313
      $region36: #{forward_model.1} parent=31 // pred_fallthru
        _
      // Predicated region
      $region37: #{forward_model.1} parent=31 // pred_check
        %p315 = pneg %p74
      $region38: #{forward_model.1} parent=31 // pred_check_branch
        %317 = sbr.rel (%p315) target = $region40
      $region39: #{forward_model.1} parent=31 // pred_region
        %p318 = scmp.lt.s32.totalorder %s23, 1
        %s319 = scalar_select %p318, %s23, 1
        %s320 = smul.addr %s319, 2
        %s321 = smul.addr %s320, 8
        %s322 = scalar_lea.vmem %s1, %s321
      $region40: #{forward_model.1} parent=31 // pred_fallthru
        _
      // Predicated region
      $region41: #{forward_model.1} parent=31 // pred_check
        %p323 = pneg %p102
      $region42: #{forward_model.1} parent=31 // pred_check_branch
        %325 = sbr.rel (%p323) target = $region44
      $region43: #{forward_model.1} parent=31 // pred_region
        %s326 = smul.u32 8, %s24
        %p327 = scmp.lt.s32.totalorder %s23, 1
        %s328 = scalar_select %p327, %s23, 1
        %p329 = scmp.lt.s32.totalorder %s326, 7
        %s330 = scalar_select %p329, %s326, 7
        %s331 = smul.addr %s328, 8
        %s332 = sadd.s32 %s330, %s331
        %s333 = smul.addr %s332, 8
        %s334 = scalar_lea.vmem %s2, %s333
        %s335 = smul.u32 8, %s24
      $region44: #{forward_model.1} parent=31 // pred_fallthru
        _
      // Predicated region
      $region45: #{forward_model.1} parent=31 // pred_check
        %p336 = pneg %p130
      $region46: #{forward_model.1} parent=31 // pred_check_branch
        %338 = sbr.rel (%p336) target = $region48
      $region47: #{forward_model.1} parent=31 // pred_region
        %s339 = smul.u32 8, %s24
        %p340 = scmp.lt.s32.totalorder %s23, 1
        %s341 = scalar_select %p340, %s23, 1
        %p342 = scmp.lt.s32.totalorder %s339, 7
        %s343 = scalar_select %p342, %s339, 7
        %s344 = smul.addr %s341, 8
        %s345 = sadd.s32 %s343, %s344
        %s346 = smul.addr %s345, 8
        %s347 = scalar_lea.vmem %s3, %s346
        %s348 = smul.u32 8, %s24
      $region48: #{forward_model.1} parent=31 // pred_fallthru
        _
    $region32: #{forward_model.1} parent=5 // pred_fallthru
      _
    %p349 = scmp.le.s32.totalorder 1, %s16
    %p350 = scmp.lt.s32.totalorder %s16, 3
    %p351 = pnand %p349, %p350
    %p352 = pneg %p351
    // Predicated region
    $region49: #{forward_model.1} parent=5 // pred_check
      _
    $region50: #{forward_model.1} parent=5 // pred_check_branch
      %354 = sbr.rel (%p351) target = $region52
    $region51: #{forward_model.1} parent=5 // pred_region
      %s355 = ssub.s32 %s16, 1
      %p356 = scmp.lt.s32.totalorder %s25, 1
      %s357 = scalar_select %p356, %s25, 1
      %s358 = smul.addr %s357, 2
      %s359 = smul.addr %s358, 8
      %s360 = scalar_lea.vmem %s0, %s359
      %p361 = pneg %p54
      %p362 = pneg %p51
      %p363 = scmp.lt.s32.totalorder %s25, 1
      %s364 = scalar_select %p363, %s25, 1
      %s365 = smul.addr %s364, 2
      %s366 = smul.addr %s365, 8
      %s367 = scalar_lea.vmem %s1, %s366
      %p368 = pneg %p80
      %p369 = pneg %p77
      %s370 = smul.u32 8, %s26
      %p371 = scmp.lt.s32.totalorder %s25, 1
      %s372 = scalar_select %p371, %s25, 1
      %p373 = scmp.lt.s32.totalorder %s370, 7
      %s374 = scalar_select %p373, %s370, 7
      %s375 = smul.addr %s372, 8
      %s376 = sadd.s32 %s374, %s375
      %s377 = smul.addr %s376, 8
      %s378 = scalar_lea.vmem %s2, %s377
      %p379 = pneg %p108
      %p380 = pneg %p105
      %s381 = smul.u32 8, %s26
      %p382 = scmp.lt.s32.totalorder %s25, 1
      %s383 = scalar_select %p382, %s25, 1
      %p384 = scmp.lt.s32.totalorder %s381, 7
      %s385 = scalar_select %p384, %s381, 7
      %s386 = smul.addr %s383, 8
      %s387 = sadd.s32 %s385, %s386
      %s388 = smul.addr %s387, 8
      %s389 = scalar_lea.vmem %s3, %s388
      %p390 = pneg %p136
      %p391 = pneg %p133
      %p392 = pneg %p157
      %p393 = pneg %p154
      %p394 = pneg %p178
      %p395 = pneg %p175
      %p396 = pneg %p199
      %p397 = pneg %p196
      %p398 = pneg %p220
      %p399 = pneg %p217
      %p400 = pneg %p248
      %p401 = pneg %p245
      %s402 = smul.u32 8, %s26
      %p403 = scmp.lt.s32.totalorder %s25, 1
      %s404 = scalar_select %p403, %s25, 1
      %p405 = scmp.lt.s32.totalorder %s402, 7
      %s406 = scalar_select %p405, %s402, 7
      %s407 = smul.addr %s404, 8
      %s408 = sadd.s32 %s406, %s407
      %s409 = smul.addr %s408, 8
      %s410 = scalar_lea.vmem %s8, %s409
      %p411 = pneg %p276
      %p412 = pneg %p273
      %s413 = smul.u32 8, %s26
      %p414 = scmp.lt.s32.totalorder %s25, 1
      %s415 = scalar_select %p414, %s25, 1
      %p416 = scmp.lt.s32.totalorder %s413, 7
      %s417 = scalar_select %p416, %s413, 7
      %s418 = smul.addr %s415, 8
      %s419 = sadd.s32 %s417, %s418
      %s420 = smul.addr %s419, 8
      %s421 = scalar_lea.vmem %s9, %s420
      %p422 = scmp.lt.s32.totalorder %s25, 1
      %s423 = scalar_select %p422, %s25, 1
      %s424 = smul.addr %s423, 2
      %s425 = smul.addr %s424, 8
      %s426 = scalar_lea.vmem %s0, %s425
      %p427 = scmp.lt.s32.totalorder %s25, 1
      %s428 = scalar_select %p427, %s25, 1
      %s429 = smul.addr %s428, 2
      %s430 = smul.addr %s429, 8
      %s431 = scalar_lea.vmem %s1, %s430
      %s432 = smul.u32 8, %s26
      %p433 = scmp.lt.s32.totalorder %s25, 1
      %s434 = scalar_select %p433, %s25, 1
      %p435 = scmp.lt.s32.totalorder %s432, 7
      %s436 = scalar_select %p435, %s432, 7
      %s437 = smul.addr %s434, 8
      %s438 = sadd.s32 %s436, %s437
      %s439 = smul.addr %s438, 8
      %s440 = scalar_lea.vmem %s2, %s439
      %s441 = smul.u32 8, %s26
      %s442 = smul.u32 8, %s26
      %p443 = scmp.lt.s32.totalorder %s25, 1
      %s444 = scalar_select %p443, %s25, 1
      %p445 = scmp.lt.s32.totalorder %s442, 7
      %s446 = scalar_select %p445, %s442, 7
      %s447 = smul.addr %s444, 8
      %s448 = sadd.s32 %s446, %s447
      %s449 = smul.addr %s448, 8
      %s450 = scalar_lea.vmem %s3, %s449
      %s451 = smul.u32 8, %s26
      %s452 = smul.u32 8, %s26
      %p453 = scmp.lt.s32.totalorder %s25, 1
      %s454 = scalar_select %p453, %s25, 1
      %p455 = scmp.lt.s32.totalorder %s452, 7
      %s456 = scalar_select %p455, %s452, 7
      %s457 = smul.addr %s454, 8
      %s458 = sadd.s32 %s456, %s457
      %s459 = smul.addr %s458, 8
      %s460 = scalar_lea.vmem %s8, %s459
      %s461 = smul.u32 8, %s26
      %s462 = smul.u32 8, %s26
      %p463 = scmp.lt.s32.totalorder %s25, 1
      %s464 = scalar_select %p463, %s25, 1
      %p465 = scmp.lt.s32.totalorder %s462, 7
      %s466 = scalar_select %p465, %s462, 7
      %s467 = smul.addr %s464, 8
      %s468 = sadd.s32 %s466, %s467
      %s469 = smul.addr %s468, 8
      %s470 = scalar_lea.vmem %s9, %s469
      %s471 = smul.u32 8, %s26
      %v472 = vld [vmem:[%s426] sm:$0xff]
      %v473 = vld [vmem:[%s426 + $0x8] sm:$0xff]
      %v474 = vld [vmem:[%s431] sm:$0xff]
      %v475 = vld [vmem:[%s431 + $0x8] sm:$0xff]
      %v476 = vld [vmem:[%s4] sm:$0xff]
      %v477 = vld [vmem:[%s4 + $0x8] sm:$0xff]
      %v478 = vld [vmem:[%s5] sm:$0xff]
      %v479 = vld [vmem:[%s5 + $0x8] sm:$0xff]
      %v480 = vadd.f32 %v476, %v478
      %v481 = vadd.f32 %v477, %v479
      %v482 = vld [vmem:[%s440] sm:$0xff]
      %v483 = vld [vmem:[%s440 + $0x8] sm:$0xff]
      %v484 = vld [vmem:[%s450] sm:$0xff]
      %v485 = vld [vmem:[%s450 + $0x8] sm:$0xff]
      %v486 = vmul.f32 %v472, %v482
      %v487 = vmul.f32 %v473, %v483
      %v488 = vmul.f32 %v474, %v484
      %v489 = vmul.f32 %v475, %v485
      %v490 = vsub.f32 %v486, %v488
      %v491 = vsub.f32 %v487, %v489
      %v492 = vmul.f32 %v472, %v484
      %v493 = vmul.f32 %v473, %v485
      %v494 = vmul.f32 %v474, %v482
      %v495 = vmul.f32 %v475, %v483
      %v496 = vadd.f32 %v492, %v494
      %v497 = vadd.f32 %v493, %v495
      %vm498 = vcmask 130048
      %v500 = vsel %vm498, %v476, 0
      %v503 = vsel %vm498, %v477, 0
      %505 = vmatpush.msra.mxu0 0.0
      %506 = vmatpush.msra.mxu0 0.0
      %507 = vmatpush.msra.mxu0 0.0
      %508 = vmatpush.msra.mxu0 0.0
      %509 = vmatpush.msra.mxu0 0.0
      %510 = vmatpush.msra.mxu0 0.0
      %511 = vmatpush.msra.mxu0 0.0
      %512 = vmatpush.msra.mxu0 0.0
      %513 = vmatpush.msra.mxu0 0.0
      %514 = vmatpush.msra.mxu0 0.0
      %515 = vmatpush.msra.mxu0 0.0
      %516 = vmatpush.msra.mxu0 0.0
      %517 = vmatpush.msra.mxu0 0.0
      %518 = vmatpush.msra.mxu0 0.0
      %519 = vmatpush.msra.mxu0 %v491
      %520 = vmatpush.msra.mxu0 %v490
      %521 = vmatmul.f32.gmra.mxu0 %v500
      %v522 = vpop.f32.mrf.mxu0
      %v523 = vadd.f32 0.0, %v522
      %524 = vmatmul.f32.gmra.mxu0 %v503
      %v525 = vpop.f32.mrf.mxu0
      %v526 = vadd.f32 0.0, %v525
      %527 = vdwg.mxu0
      %v529 = vsel %vm498, %v478, 0
      %v532 = vsel %vm498, %v479, 0
      %534 = vmatpush.msra.mxu0 0.0
      %535 = vmatpush.msra.mxu0 0.0
      %536 = vmatpush.msra.mxu0 0.0
      %537 = vmatpush.msra.mxu0 0.0
      %538 = vmatpush.msra.mxu0 0.0
      %539 = vmatpush.msra.mxu0 0.0
      %540 = vmatpush.msra.mxu0 0.0
      %541 = vmatpush.msra.mxu0 0.0
      %542 = vmatpush.msra.mxu0 0.0
      %543 = vmatpush.msra.mxu0 0.0
      %544 = vmatpush.msra.mxu0 0.0
      %545 = vmatpush.msra.mxu0 0.0
      %546 = vmatpush.msra.mxu0 0.0
      %547 = vmatpush.msra.mxu0 0.0
      %548 = vmatpush.msra.mxu0 %v497
      %549 = vmatpush.msra.mxu0 %v496
      %550 = vmatmul.f32.gmra.mxu0 %v529
      %v551 = vpop.f32.mrf.mxu0
      %v552 = vadd.f32 0.0, %v551
      %553 = vmatmul.f32.gmra.mxu0 %v532
      %v554 = vpop.f32.mrf.mxu0
      %v555 = vadd.f32 0.0, %v554
      %556 = vdwg.mxu0
      %v557 = vadd.f32 %v490, %v496
      %v558 = vadd.f32 %v491, %v497
      %v560 = vsel %vm498, %v480, 0
      %v563 = vsel %vm498, %v481, 0
      %565 = vmatpush.msra.mxu0 0.0
      %566 = vmatpush.msra.mxu0 0.0
      %567 = vmatpush.msra.mxu0 0.0
      %568 = vmatpush.msra.mxu0 0.0
      %569 = vmatpush.msra.mxu0 0.0
      %570 = vmatpush.msra.mxu0 0.0
      %571 = vmatpush.msra.mxu0 0.0
      %572 = vmatpush.msra.mxu0 0.0
      %573 = vmatpush.msra.mxu0 0.0
      %574 = vmatpush.msra.mxu0 0.0
      %575 = vmatpush.msra.mxu0 0.0
      %576 = vmatpush.msra.mxu0 0.0
      %577 = vmatpush.msra.mxu0 0.0
      %578 = vmatpush.msra.mxu0 0.0
      %579 = vmatpush.msra.mxu0 %v558
      %580 = vmatpush.msra.mxu0 %v557
      %581 = vmatmul.f32.gmra.mxu0 %v560
      %v582 = vpop.f32.mrf.mxu0
      %v583 = vadd.f32 0.0, %v582
      %584 = vmatmul.f32.gmra.mxu0 %v563
      %v585 = vpop.f32.mrf.mxu0
      %v586 = vadd.f32 0.0, %v585
      %587 = vdwg.mxu0
      %v588 = vsub.f32 %v523, %v552
      %v589 = vsub.f32 %v526, %v555
      %v590 = vsub.f32 %v583, %v523
      %v591 = vsub.f32 %v586, %v526
      %v592 = vsub.f32 %v590, %v552
      %v593 = vsub.f32 %v591, %v555
      %v594 = vadd.f32 %v588, %v592
      %v595 = vadd.f32 %v589, %v593
      %596 = vst.msk [vmem:[#allocation4] sm:$0xff] %vm498, %v594
      %597 = vst.msk [vmem:[#allocation4 + $0x8] sm:$0xff] %vm498, %v595
      %598 = vst.msk [vmem:[#allocation2] sm:$0xff] %vm498, %v588
      %599 = vst.msk [vmem:[#allocation2 + $0x8] sm:$0xff] %vm498, %v589
      %600 = vst.msk [vmem:[#allocation3] sm:$0xff] %vm498, %v592
      %601 = vst.msk [vmem:[#allocation3 + $0x8] sm:$0xff] %vm498, %v593
      %v602 = vld [vmem:[%s440 + $0x10] sm:$0xff]
      %v603 = vld [vmem:[%s440 + $0x18] sm:$0xff]
      %v604 = vld [vmem:[%s450 + $0x10] sm:$0xff]
      %v605 = vld [vmem:[%s450 + $0x18] sm:$0xff]
      %v606 = vmul.f32 %v472, %v602
      %v607 = vmul.f32 %v473, %v603
      %v608 = vmul.f32 %v474, %v604
      %v609 = vmul.f32 %v475, %v605
      %v610 = vsub.f32 %v606, %v608
      %v611 = vsub.f32 %v607, %v609
      %v612 = vmul.f32 %v472, %v604
      %v613 = vmul.f32 %v473, %v605
      %v614 = vmul.f32 %v474, %v602
      %v615 = vmul.f32 %v475, %v603
      %v616 = vadd.f32 %v612, %v614
      %v617 = vadd.f32 %v613, %v615
      %618 = vmatpush.msra.mxu0 0.0
      %619 = vmatpush.msra.mxu0 0.0
      %620 = vmatpush.msra.mxu0 0.0
      %621 = vmatpush.msra.mxu0 0.0
      %622 = vmatpush.msra.mxu0 0.0
      %623 = vmatpush.msra.mxu0 0.0
      %624 = vmatpush.msra.mxu0 0.0
      %625 = vmatpush.msra.mxu0 0.0
      %626 = vmatpush.msra.mxu0 0.0
      %627 = vmatpush.msra.mxu0 0.0
      %628 = vmatpush.msra.mxu0 0.0
      %629 = vmatpush.msra.mxu0 0.0
      %630 = vmatpush.msra.mxu0 0.0
      %631 = vmatpush.msra.mxu0 0.0
      %632 = vmatpush.msra.mxu0 %v611
      %633 = vmatpush.msra.mxu0 %v610
      %634 = vmatmul.f32.gmra.mxu0 %v500
      %v635 = vpop.f32.mrf.mxu0
      %v636 = vadd.f32 0.0, %v635
      %637 = vmatmul.f32.gmra.mxu0 %v503
      %v638 = vpop.f32.mrf.mxu0
      %v639 = vadd.f32 0.0, %v638
      %640 = vdwg.mxu0
      %641 = vmatpush.msra.mxu0 0.0
      %642 = vmatpush.msra.mxu0 0.0
      %643 = vmatpush.msra.mxu0 0.0
      %644 = vmatpush.msra.mxu0 0.0
      %645 = vmatpush.msra.mxu0 0.0
      %646 = vmatpush.msra.mxu0 0.0
      %647 = vmatpush.msra.mxu0 0.0
      %648 = vmatpush.msra.mxu0 0.0
      %649 = vmatpush.msra.mxu0 0.0
      %650 = vmatpush.msra.mxu0 0.0
      %651 = vmatpush.msra.mxu0 0.0
      %652 = vmatpush.msra.mxu0 0.0
      %653 = vmatpush.msra.mxu0 0.0
      %654 = vmatpush.msra.mxu0 0.0
      %655 = vmatpush.msra.mxu0 %v617
      %656 = vmatpush.msra.mxu0 %v616
      %657 = vmatmul.f32.gmra.mxu0 %v529
      %v658 = vpop.f32.mrf.mxu0
      %v659 = vadd.f32 0.0, %v658
      %660 = vmatmul.f32.gmra.mxu0 %v532
      %v661 = vpop.f32.mrf.mxu0
      %v662 = vadd.f32 0.0, %v661
      %663 = vdwg.mxu0
      %v664 = vadd.f32 %v610, %v616
      %v665 = vadd.f32 %v611, %v617
      %666 = vmatpush.msra.mxu0 0.0
      %667 = vmatpush.msra.mxu0 0.0
      %668 = vmatpush.msra.mxu0 0.0
      %669 = vmatpush.msra.mxu0 0.0
      %670 = vmatpush.msra.mxu0 0.0
      %671 = vmatpush.msra.mxu0 0.0
      %672 = vmatpush.msra.mxu0 0.0
      %673 = vmatpush.msra.mxu0 0.0
      %674 = vmatpush.msra.mxu0 0.0
      %675 = vmatpush.msra.mxu0 0.0
      %676 = vmatpush.msra.mxu0 0.0
      %677 = vmatpush.msra.mxu0 0.0
      %678 = vmatpush.msra.mxu0 0.0
      %679 = vmatpush.msra.mxu0 0.0
      %680 = vmatpush.msra.mxu0 %v665
      %681 = vmatpush.msra.mxu0 %v664
      %682 = vmatmul.f32.gmra.mxu0 %v560
      %v683 = vpop.f32.mrf.mxu0
      %v684 = vadd.f32 0.0, %v683
      %685 = vmatmul.f32.gmra.mxu0 %v563
      %v686 = vpop.f32.mrf.mxu0
      %v687 = vadd.f32 0.0, %v686
      %688 = vdwg.mxu0
      %v689 = vsub.f32 %v636, %v659
      %v690 = vsub.f32 %v639, %v662
      %v691 = vsub.f32 %v684, %v636
      %v692 = vsub.f32 %v687, %v639
      %v693 = vsub.f32 %v691, %v659
      %v694 = vsub.f32 %v692, %v662
      %v695 = vadd.f32 %v689, %v693
      %v696 = vadd.f32 %v690, %v694
      %697 = vst.msk [vmem:[#allocation4 + $0x10] sm:$0xff] %vm498, %v695
      %698 = vst.msk [vmem:[#allocation4 + $0x18] sm:$0xff] %vm498, %v696
      %699 = vst.msk [vmem:[#allocation2 + $0x10] sm:$0xff] %vm498, %v689
      %700 = vst.msk [vmem:[#allocation2 + $0x18] sm:$0xff] %vm498, %v690
      %701 = vst.msk [vmem:[#allocation3 + $0x10] sm:$0xff] %vm498, %v693
      %702 = vst.msk [vmem:[#allocation3 + $0x18] sm:$0xff] %vm498, %v694
      %v703 = vld [vmem:[%s440 + $0x20] sm:$0xff]
      %v704 = vld [vmem:[%s440 + $0x28] sm:$0xff]
      %v705 = vld [vmem:[%s450 + $0x20] sm:$0xff]
      %v706 = vld [vmem:[%s450 + $0x28] sm:$0xff]
      %v707 = vmul.f32 %v472, %v703
      %v708 = vmul.f32 %v473, %v704
      %v709 = vmul.f32 %v474, %v705
      %v710 = vmul.f32 %v475, %v706
      %v711 = vsub.f32 %v707, %v709
      %v712 = vsub.f32 %v708, %v710
      %v713 = vmul.f32 %v472, %v705
      %v714 = vmul.f32 %v473, %v706
      %v715 = vmul.f32 %v474, %v703
      %v716 = vmul.f32 %v475, %v704
      %v717 = vadd.f32 %v713, %v715
      %v718 = vadd.f32 %v714, %v716
      %719 = vmatpush.msra.mxu0 0.0
      %720 = vmatpush.msra.mxu0 0.0
      %721 = vmatpush.msra.mxu0 0.0
      %722 = vmatpush.msra.mxu0 0.0
      %723 = vmatpush.msra.mxu0 0.0
      %724 = vmatpush.msra.mxu0 0.0
      %725 = vmatpush.msra.mxu0 0.0
      %726 = vmatpush.msra.mxu0 0.0
      %727 = vmatpush.msra.mxu0 0.0
      %728 = vmatpush.msra.mxu0 0.0
      %729 = vmatpush.msra.mxu0 0.0
      %730 = vmatpush.msra.mxu0 0.0
      %731 = vmatpush.msra.mxu0 0.0
      %732 = vmatpush.msra.mxu0 0.0
      %733 = vmatpush.msra.mxu0 %v712
      %734 = vmatpush.msra.mxu0 %v711
      %735 = vmatmul.f32.gmra.mxu0 %v500
      %v736 = vpop.f32.mrf.mxu0
      %v737 = vadd.f32 0.0, %v736
      %738 = vmatmul.f32.gmra.mxu0 %v503
      %v739 = vpop.f32.mrf.mxu0
      %v740 = vadd.f32 0.0, %v739
      %741 = vdwg.mxu0
      %742 = vmatpush.msra.mxu0 0.0
      %743 = vmatpush.msra.mxu0 0.0
      %744 = vmatpush.msra.mxu0 0.0
      %745 = vmatpush.msra.mxu0 0.0
      %746 = vmatpush.msra.mxu0 0.0
      %747 = vmatpush.msra.mxu0 0.0
      %748 = vmatpush.msra.mxu0 0.0
      %749 = vmatpush.msra.mxu0 0.0
      %750 = vmatpush.msra.mxu0 0.0
      %751 = vmatpush.msra.mxu0 0.0
      %752 = vmatpush.msra.mxu0 0.0
      %753 = vmatpush.msra.mxu0 0.0
      %754 = vmatpush.msra.mxu0 0.0
      %755 = vmatpush.msra.mxu0 0.0
      %756 = vmatpush.msra.mxu0 %v718
      %757 = vmatpush.msra.mxu0 %v717
      %758 = vmatmul.f32.gmra.mxu0 %v529
      %v759 = vpop.f32.mrf.mxu0
      %v760 = vadd.f32 0.0, %v759
      %761 = vmatmul.f32.gmra.mxu0 %v532
      %v762 = vpop.f32.mrf.mxu0
      %v763 = vadd.f32 0.0, %v762
      %764 = vdwg.mxu0
      %v765 = vadd.f32 %v711, %v717
      %v766 = vadd.f32 %v712, %v718
      %767 = vmatpush.msra.mxu0 0.0
      %768 = vmatpush.msra.mxu0 0.0
      %769 = vmatpush.msra.mxu0 0.0
      %770 = vmatpush.msra.mxu0 0.0
      %771 = vmatpush.msra.mxu0 0.0
      %772 = vmatpush.msra.mxu0 0.0
      %773 = vmatpush.msra.mxu0 0.0
      %774 = vmatpush.msra.mxu0 0.0
      %775 = vmatpush.msra.mxu0 0.0
      %776 = vmatpush.msra.mxu0 0.0
      %777 = vmatpush.msra.mxu0 0.0
      %778 = vmatpush.msra.mxu0 0.0
      %779 = vmatpush.msra.mxu0 0.0
      %780 = vmatpush.msra.mxu0 0.0
      %781 = vmatpush.msra.mxu0 %v766
      %782 = vmatpush.msra.mxu0 %v765
      %783 = vmatmul.f32.gmra.mxu0 %v560
      %v784 = vpop.f32.mrf.mxu0
      %v785 = vadd.f32 0.0, %v784
      %786 = vmatmul.f32.gmra.mxu0 %v563
      %v787 = vpop.f32.mrf.mxu0
      %v788 = vadd.f32 0.0, %v787
      %789 = vdwg.mxu0
      %v790 = vsub.f32 %v737, %v760
      %v791 = vsub.f32 %v740, %v763
      %v792 = vsub.f32 %v785, %v737
      %v793 = vsub.f32 %v788, %v740
      %v794 = vsub.f32 %v792, %v760
      %v795 = vsub.f32 %v793, %v763
      %v796 = vadd.f32 %v790, %v794
      %v797 = vadd.f32 %v791, %v795
      %798 = vst.msk [vmem:[#allocation4 + $0x20] sm:$0xff] %vm498, %v796
      %799 = vst.msk [vmem:[#allocation4 + $0x28] sm:$0xff] %vm498, %v797
      %800 = vst.msk [vmem:[#allocation2 + $0x20] sm:$0xff] %vm498, %v790
      %801 = vst.msk [vmem:[#allocation2 + $0x28] sm:$0xff] %vm498, %v791
      %802 = vst.msk [vmem:[#allocation3 + $0x20] sm:$0xff] %vm498, %v794
      %803 = vst.msk [vmem:[#allocation3 + $0x28] sm:$0xff] %vm498, %v795
      %v804 = vld [vmem:[%s440 + $0x30] sm:$0xff]
      %v805 = vld [vmem:[%s440 + $0x38] sm:$0xff]
      %v806 = vld [vmem:[%s450 + $0x30] sm:$0xff]
      %v807 = vld [vmem:[%s450 + $0x38] sm:$0xff]
      %v808 = vmul.f32 %v472, %v804
      %v809 = vmul.f32 %v473, %v805
      %v810 = vmul.f32 %v474, %v806
      %v811 = vmul.f32 %v475, %v807
      %v812 = vsub.f32 %v808, %v810
      %v813 = vsub.f32 %v809, %v811
      %v814 = vmul.f32 %v472, %v806
      %v815 = vmul.f32 %v473, %v807
      %v816 = vmul.f32 %v474, %v804
      %v817 = vmul.f32 %v475, %v805
      %v818 = vadd.f32 %v814, %v816
      %v819 = vadd.f32 %v815, %v817
      %820 = vmatpush.msra.mxu0 0.0
      %821 = vmatpush.msra.mxu0 0.0
      %822 = vmatpush.msra.mxu0 0.0
      %823 = vmatpush.msra.mxu0 0.0
      %824 = vmatpush.msra.mxu0 0.0
      %825 = vmatpush.msra.mxu0 0.0
      %826 = vmatpush.msra.mxu0 0.0
      %827 = vmatpush.msra.mxu0 0.0
      %828 = vmatpush.msra.mxu0 0.0
      %829 = vmatpush.msra.mxu0 0.0
      %830 = vmatpush.msra.mxu0 0.0
      %831 = vmatpush.msra.mxu0 0.0
      %832 = vmatpush.msra.mxu0 0.0
      %833 = vmatpush.msra.mxu0 0.0
      %834 = vmatpush.msra.mxu0 %v813
      %835 = vmatpush.msra.mxu0 %v812
      %836 = vmatmul.f32.gmra.mxu0 %v500
      %v837 = vpop.f32.mrf.mxu0
      %v838 = vadd.f32 0.0, %v837
      %839 = vmatmul.f32.gmra.mxu0 %v503
      %v840 = vpop.f32.mrf.mxu0
      %v841 = vadd.f32 0.0, %v840
      %842 = vdwg.mxu0
      %843 = vmatpush.msra.mxu0 0.0
      %844 = vmatpush.msra.mxu0 0.0
      %845 = vmatpush.msra.mxu0 0.0
      %846 = vmatpush.msra.mxu0 0.0
      %847 = vmatpush.msra.mxu0 0.0
      %848 = vmatpush.msra.mxu0 0.0
      %849 = vmatpush.msra.mxu0 0.0
      %850 = vmatpush.msra.mxu0 0.0
      %851 = vmatpush.msra.mxu0 0.0
      %852 = vmatpush.msra.mxu0 0.0
      %853 = vmatpush.msra.mxu0 0.0
      %854 = vmatpush.msra.mxu0 0.0
      %855 = vmatpush.msra.mxu0 0.0
      %856 = vmatpush.msra.mxu0 0.0
      %857 = vmatpush.msra.mxu0 %v819
      %858 = vmatpush.msra.mxu0 %v818
      %859 = vmatmul.f32.gmra.mxu0 %v529
      %v860 = vpop.f32.mrf.mxu0
      %v861 = vadd.f32 0.0, %v860
      %862 = vmatmul.f32.gmra.mxu0 %v532
      %v863 = vpop.f32.mrf.mxu0
      %v864 = vadd.f32 0.0, %v863
      %865 = vdwg.mxu0
      %v866 = vadd.f32 %v812, %v818
      %v867 = vadd.f32 %v813, %v819
      %868 = vmatpush.msra.mxu0 0.0
      %869 = vmatpush.msra.mxu0 0.0
      %870 = vmatpush.msra.mxu0 0.0
      %871 = vmatpush.msra.mxu0 0.0
      %872 = vmatpush.msra.mxu0 0.0
      %873 = vmatpush.msra.mxu0 0.0
      %874 = vmatpush.msra.mxu0 0.0
      %875 = vmatpush.msra.mxu0 0.0
      %876 = vmatpush.msra.mxu0 0.0
      %877 = vmatpush.msra.mxu0 0.0
      %878 = vmatpush.msra.mxu0 0.0
      %879 = vmatpush.msra.mxu0 0.0
      %880 = vmatpush.msra.mxu0 0.0
      %881 = vmatpush.msra.mxu0 0.0
      %882 = vmatpush.msra.mxu0 %v867
      %883 = vmatpush.msra.mxu0 %v866
      %884 = vmatmul.f32.gmra.mxu0 %v560
      %v885 = vpop.f32.mrf.mxu0
      %v886 = vadd.f32 0.0, %v885
      %887 = vmatmul.f32.gmra.mxu0 %v563
      %v888 = vpop.f32.mrf.mxu0
      %v889 = vadd.f32 0.0, %v888
      %890 = vdwg.mxu0
      %v891 = vsub.f32 %v838, %v861
      %v892 = vsub.f32 %v841, %v864
      %v893 = vsub.f32 %v886, %v838
      %v894 = vsub.f32 %v889, %v841
      %v895 = vsub.f32 %v893, %v861
      %v896 = vsub.f32 %v894, %v864
      %v897 = vadd.f32 %v891, %v895
      %v898 = vadd.f32 %v892, %v896
      %899 = vst.msk [vmem:[#allocation4 + $0x30] sm:$0xff] %vm498, %v897
      %900 = vst.msk [vmem:[#allocation4 + $0x38] sm:$0xff] %vm498, %v898
      %901 = vst.msk [vmem:[#allocation2 + $0x30] sm:$0xff] %vm498, %v891
      %902 = vst.msk [vmem:[#allocation2 + $0x38] sm:$0xff] %vm498, %v892
      %903 = vst.msk [vmem:[#allocation3 + $0x30] sm:$0xff] %vm498, %v895
      %904 = vst.msk [vmem:[#allocation3 + $0x38] sm:$0xff] %vm498, %v896
      %v905 = vld [vmem:[#allocation2] sm:$0xff]
      %v906 = vld [vmem:[#allocation2 + $0x8] sm:$0xff]
      %v907 = vld [vmem:[#allocation2 + $0x10] sm:$0xff]
      %v908 = vld [vmem:[#allocation2 + $0x18] sm:$0xff]
      %v909 = vld [vmem:[#allocation2 + $0x20] sm:$0xff]
      %v910 = vld [vmem:[#allocation2 + $0x28] sm:$0xff]
      %v911 = vld [vmem:[#allocation2 + $0x30] sm:$0xff]
      %v912 = vld [vmem:[#allocation2 + $0x38] sm:$0xff]
      %v913 = vld [vmem:[#allocation3] sm:$0xff]
      %v914 = vld [vmem:[#allocation3 + $0x8] sm:$0xff]
      %v915 = vld [vmem:[#allocation3 + $0x10] sm:$0xff]
      %v916 = vld [vmem:[#allocation3 + $0x18] sm:$0xff]
      %v917 = vld [vmem:[#allocation3 + $0x20] sm:$0xff]
      %v918 = vld [vmem:[#allocation3 + $0x28] sm:$0xff]
      %v919 = vld [vmem:[#allocation3 + $0x30] sm:$0xff]
      %v920 = vld [vmem:[#allocation3 + $0x38] sm:$0xff]
      %v921 = vld [vmem:[%s6] sm:$0xff]
      %v922 = vld [vmem:[%s6 + $0x8] sm:$0xff]
      %v923 = vld [vmem:[%s7] sm:$0xff]
      %v924 = vld [vmem:[%s7 + $0x8] sm:$0xff]
      %v925 = vadd.f32 %v921, %v923
      %v926 = vadd.f32 %v922, %v924
      %v928 = vsel %vm498, %v905, 0
      %v931 = vsel %vm498, %v906, 0
      %v934 = vsel %vm498, %v907, 0
      %v937 = vsel %vm498, %v908, 0
      %v940 = vsel %vm498, %v909, 0
      %v943 = vsel %vm498, %v910, 0
      %v946 = vsel %vm498, %v911, 0
      %v949 = vsel %vm498, %v912, 0
      %951 = vmatpush.msra.mxu0 0.0
      %952 = vmatpush.msra.mxu0 0.0
      %953 = vmatpush.msra.mxu0 0.0
      %954 = vmatpush.msra.mxu0 0.0
      %955 = vmatpush.msra.mxu0 0.0
      %956 = vmatpush.msra.mxu0 0.0
      %957 = vmatpush.msra.mxu0 0.0
      %958 = vmatpush.msra.mxu0 0.0
      %959 = vmatpush.msra.mxu0 0.0
      %960 = vmatpush.msra.mxu0 0.0
      %961 = vmatpush.msra.mxu0 0.0
      %962 = vmatpush.msra.mxu0 0.0
      %963 = vmatpush.msra.mxu0 0.0
      %964 = vmatpush.msra.mxu0 0.0
      %965 = vmatpush.msra.mxu0 %v922
      %966 = vmatpush.msra.mxu0 %v921
      %967 = vmatmul.f32.gmra.mxu0 %v928
      %v968 = vpop.f32.mrf.mxu0
      %v969 = vadd.f32 0.0, %v968
      %970 = vmatmul.f32.gmra.mxu0 %v931
      %v971 = vpop.f32.mrf.mxu0
      %v972 = vadd.f32 0.0, %v971
      %973 = vmatmul.f32.gmra.mxu0 %v934
      %v974 = vpop.f32.mrf.mxu0
      %v975 = vadd.f32 0.0, %v974
      %976 = vmatmul.f32.gmra.mxu0 %v937
      %v977 = vpop.f32.mrf.mxu0
      %v978 = vadd.f32 0.0, %v977
      %979 = vmatmul.f32.gmra.mxu0 %v940
      %v980 = vpop.f32.mrf.mxu0
      %v981 = vadd.f32 0.0, %v980
      %982 = vmatmul.f32.gmra.mxu0 %v943
      %v983 = vpop.f32.mrf.mxu0
      %v984 = vadd.f32 0.0, %v983
      %985 = vmatmul.f32.gmra.mxu0 %v946
      %v986 = vpop.f32.mrf.mxu0
      %v987 = vadd.f32 0.0, %v986
      %988 = vmatmul.f32.gmra.mxu0 %v949
      %v989 = vpop.f32.mrf.mxu0
      %v990 = vadd.f32 0.0, %v989
      %991 = vdwg.mxu0
      %v993 = vsel %vm498, %v913, 0
      %v996 = vsel %vm498, %v914, 0
      %v999 = vsel %vm498, %v915, 0
      %v1002 = vsel %vm498, %v916, 0
      %v1005 = vsel %vm498, %v917, 0
      %v1008 = vsel %vm498, %v918, 0
      %v1011 = vsel %vm498, %v919, 0
      %v1014 = vsel %vm498, %v920, 0
      %1016 = vmatpush.msra.mxu0 0.0
      %1017 = vmatpush.msra.mxu0 0.0
      %1018 = vmatpush.msra.mxu0 0.0
      %1019 = vmatpush.msra.mxu0 0.0
      %1020 = vmatpush.msra.mxu0 0.0
      %1021 = vmatpush.msra.mxu0 0.0
      %1022 = vmatpush.msra.mxu0 0.0
      %1023 = vmatpush.msra.mxu0 0.0
      %1024 = vmatpush.msra.mxu0 0.0
      %1025 = vmatpush.msra.mxu0 0.0
      %1026 = vmatpush.msra.mxu0 0.0
      %1027 = vmatpush.msra.mxu0 0.0
      %1028 = vmatpush.msra.mxu0 0.0
      %1029 = vmatpush.msra.mxu0 0.0
      %1030 = vmatpush.msra.mxu0 %v924
      %1031 = vmatpush.msra.mxu0 %v923
      %1032 = vmatmul.f32.gmra.mxu0 %v993
      %v1033 = vpop.f32.mrf.mxu0
      %v1034 = vadd.f32 0.0, %v1033
      %1035 = vmatmul.f32.gmra.mxu0 %v996
      %v1036 = vpop.f32.mrf.mxu0
      %v1037 = vadd.f32 0.0, %v1036
      %1038 = vmatmul.f32.gmra.mxu0 %v999
      %v1039 = vpop.f32.mrf.mxu0
      %v1040 = vadd.f32 0.0, %v1039
      %1041 = vmatmul.f32.gmra.mxu0 %v1002
      %v1042 = vpop.f32.mrf.mxu0
      %v1043 = vadd.f32 0.0, %v1042
      %1044 = vmatmul.f32.gmra.mxu0 %v1005
      %v1045 = vpop.f32.mrf.mxu0
      %v1046 = vadd.f32 0.0, %v1045
      %1047 = vmatmul.f32.gmra.mxu0 %v1008
      %v1048 = vpop.f32.mrf.mxu0
      %v1049 = vadd.f32 0.0, %v1048
      %1050 = vmatmul.f32.gmra.mxu0 %v1011
      %v1051 = vpop.f32.mrf.mxu0
      %v1052 = vadd.f32 0.0, %v1051
      %1053 = vmatmul.f32.gmra.mxu0 %v1014
      %v1054 = vpop.f32.mrf.mxu0
      %v1055 = vadd.f32 0.0, %v1054
      %1056 = vdwg.mxu0
      %v1057 = vld [vmem:[#allocation4] sm:$0xff]
      %v1058 = vld [vmem:[#allocation4 + $0x8] sm:$0xff]
      %v1059 = vld [vmem:[#allocation4 + $0x10] sm:$0xff]
      %v1060 = vld [vmem:[#allocation4 + $0x18] sm:$0xff]
      %v1061 = vld [vmem:[#allocation4 + $0x20] sm:$0xff]
      %v1062 = vld [vmem:[#allocation4 + $0x28] sm:$0xff]
      %v1063 = vld [vmem:[#allocation4 + $0x30] sm:$0xff]
      %v1064 = vld [vmem:[#allocation4 + $0x38] sm:$0xff]
      %v1066 = vsel %vm498, %v1057, 0
      %v1069 = vsel %vm498, %v1058, 0
      %v1072 = vsel %vm498, %v1059, 0
      %v1075 = vsel %vm498, %v1060, 0
      %v1078 = vsel %vm498, %v1061, 0
      %v1081 = vsel %vm498, %v1062, 0
      %v1084 = vsel %vm498, %v1063, 0
      %v1087 = vsel %vm498, %v1064, 0
      %1089 = vmatpush.msra.mxu0 0.0
      %1090 = vmatpush.msra.mxu0 0.0
      %1091 = vmatpush.msra.mxu0 0.0
      %1092 = vmatpush.msra.mxu0 0.0
      %1093 = vmatpush.msra.mxu0 0.0
      %1094 = vmatpush.msra.mxu0 0.0
      %1095 = vmatpush.msra.mxu0 0.0
      %1096 = vmatpush.msra.mxu0 0.0
      %1097 = vmatpush.msra.mxu0 0.0
      %1098 = vmatpush.msra.mxu0 0.0
      %1099 = vmatpush.msra.mxu0 0.0
      %1100 = vmatpush.msra.mxu0 0.0
      %1101 = vmatpush.msra.mxu0 0.0
      %1102 = vmatpush.msra.mxu0 0.0
      %1103 = vmatpush.msra.mxu0 %v926
      %1104 = vmatpush.msra.mxu0 %v925
      %1105 = vmatmul.f32.gmra.mxu0 %v1066
      %v1106 = vpop.f32.mrf.mxu0
      %v1107 = vadd.f32 0.0, %v1106
      %1108 = vmatmul.f32.gmra.mxu0 %v1069
      %v1109 = vpop.f32.mrf.mxu0
      %v1110 = vadd.f32 0.0, %v1109
      %1111 = vmatmul.f32.gmra.mxu0 %v1072
      %v1112 = vpop.f32.mrf.mxu0
      %v1113 = vadd.f32 0.0, %v1112
      %1114 = vmatmul.f32.gmra.mxu0 %v1075
      %v1115 = vpop.f32.mrf.mxu0
      %v1116 = vadd.f32 0.0, %v1115
      %1117 = vmatmul.f32.gmra.mxu0 %v1078
      %v1118 = vpop.f32.mrf.mxu0
      %v1119 = vadd.f32 0.0, %v1118
      %1120 = vmatmul.f32.gmra.mxu0 %v1081
      %v1121 = vpop.f32.mrf.mxu0
      %v1122 = vadd.f32 0.0, %v1121
      %1123 = vmatmul.f32.gmra.mxu0 %v1084
      %v1124 = vpop.f32.mrf.mxu0
      %v1125 = vadd.f32 0.0, %v1124
      %1126 = vmatmul.f32.gmra.mxu0 %v1087
      %v1127 = vpop.f32.mrf.mxu0
      %v1128 = vadd.f32 0.0, %v1127
      %1129 = vdwg.mxu0
      %v1130 = vsub.f32 %v969, %v1034
      %v1131 = vsub.f32 %v972, %v1037
      %v1132 = vsub.f32 %v975, %v1040
      %v1133 = vsub.f32 %v978, %v1043
      %v1134 = vsub.f32 %v981, %v1046
      %v1135 = vsub.f32 %v984, %v1049
      %v1136 = vsub.f32 %v987, %v1052
      %v1137 = vsub.f32 %v990, %v1055
      %1138 = vst.msk [vmem:[%s460] sm:$0xff] %vm498, %v1130
      %1139 = vst.msk [vmem:[%s460 + $0x8] sm:$0xff] %vm498, %v1131
      %1140 = vst.msk [vmem:[%s460 + $0x10] sm:$0xff] %vm498, %v1132
      %1141 = vst.msk [vmem:[%s460 + $0x18] sm:$0xff] %vm498, %v1133
      %1142 = vst.msk [vmem:[%s460 + $0x20] sm:$0xff] %vm498, %v1134
      %1143 = vst.msk [vmem:[%s460 + $0x28] sm:$0xff] %vm498, %v1135
      %1144 = vst.msk [vmem:[%s460 + $0x30] sm:$0xff] %vm498, %v1136
      %1145 = vst.msk [vmem:[%s460 + $0x38] sm:$0xff] %vm498, %v1137
      %v1146 = vsub.f32 %v1107, %v969
      %v1147 = vsub.f32 %v1110, %v972
      %v1148 = vsub.f32 %v1113, %v975
      %v1149 = vsub.f32 %v1116, %v978
      %v1150 = vsub.f32 %v1119, %v981
      %v1151 = vsub.f32 %v1122, %v984
      %v1152 = vsub.f32 %v1125, %v987
      %v1153 = vsub.f32 %v1128, %v990
      %v1154 = vsub.f32 %v1146, %v1034
      %v1155 = vsub.f32 %v1147, %v1037
      %v1156 = vsub.f32 %v1148, %v1040
      %v1157 = vsub.f32 %v1149, %v1043
      %v1158 = vsub.f32 %v1150, %v1046
      %v1159 = vsub.f32 %v1151, %v1049
      %v1160 = vsub.f32 %v1152, %v1052
      %v1161 = vsub.f32 %v1153, %v1055
      %1162 = vst.msk [vmem:[%s470] sm:$0xff] %vm498, %v1154
      %1163 = vst.msk [vmem:[%s470 + $0x8] sm:$0xff] %vm498, %v1155
      %1164 = vst.msk [vmem:[%s470 + $0x10] sm:$0xff] %vm498, %v1156
      %1165 = vst.msk [vmem:[%s470 + $0x18] sm:$0xff] %vm498, %v1157
      %1166 = vst.msk [vmem:[%s470 + $0x20] sm:$0xff] %vm498, %v1158
      %1167 = vst.msk [vmem:[%s470 + $0x28] sm:$0xff] %vm498, %v1159
      %1168 = vst.msk [vmem:[%s470 + $0x30] sm:$0xff] %vm498, %v1160
      %1169 = vst.msk [vmem:[%s470 + $0x38] sm:$0xff] %vm498, %v1161
      %s1170 = smul.u32 8, %s26
      %p1171 = scmp.lt.s32.totalorder %s25, 1
      %s1172 = scalar_select %p1171, %s25, 1
      %p1173 = scmp.lt.s32.totalorder %s1170, 7
      %s1174 = scalar_select %p1173, %s1170, 7
      %s1175 = smul.addr %s1172, 8
      %s1176 = sadd.s32 %s1174, %s1175
      %s1177 = smul.addr %s1176, 8
      %s1178 = scalar_lea.vmem %s8, %s1177
      %s1179 = smul.u32 8, %s26
      %p1180 = scmp.lt.s32.totalorder %s25, 1
      %s1181 = scalar_select %p1180, %s25, 1
      %p1182 = scmp.lt.s32.totalorder %s1179, 7
      %s1183 = scalar_select %p1182, %s1179, 7
      %s1184 = smul.addr %s1181, 8
      %s1185 = sadd.s32 %s1183, %s1184
      %s1186 = smul.addr %s1185, 8
      %s1187 = scalar_lea.vmem %s9, %s1186
      // Predicated region
      $region53: #{forward_model.1} parent=51 // pred_check
        %p1188 = pneg %p245
      $region54: #{forward_model.1} parent=51 // pred_check_branch
        %1190 = sbr.rel (%p1188) target = $region56
      $region55: #{forward_model.1} parent=51 // pred_region
        %s1191 = smul.u32 8, %s26
      $region56: #{forward_model.1} parent=51 // pred_fallthru
        _
      // Predicated region
      $region57: #{forward_model.1} parent=51 // pred_check
        %p1192 = pneg %p273
      $region58: #{forward_model.1} parent=51 // pred_check_branch
        %1194 = sbr.rel (%p1192) target = $region60
      $region59: #{forward_model.1} parent=51 // pred_region
        %s1195 = smul.u32 8, %s26
      $region60: #{forward_model.1} parent=51 // pred_fallthru
        _
    $region52: #{forward_model.1} parent=5 // pred_fallthru
      _
    %p1196 = scmp.le.s32.totalorder 2, %s16
    // Predicated region
    $region61: #{forward_model.1} parent=5 // pred_check
      %p1197 = pneg %p1196
    $region62: #{forward_model.1} parent=5 // pred_check_branch
      %1199 = sbr.rel (%p1197) target = $region64
    $region63: #{forward_model.1} parent=5 // pred_region
      %s1200 = ssub.s32 %s16, 2
      // Predicated region
      $region65: #{forward_model.1} parent=63 // pred_check
        %p1201 = pneg %p251
      $region66: #{forward_model.1} parent=63 // pred_check_branch
        %1203 = sbr.rel (%p1201) target = $region68
      $region67: #{forward_model.1} parent=63 // pred_region
        %s1204 = smul.u32 8, %s28
        %p1205 = scmp.lt.s32.totalorder %s27, 1
        %s1206 = scalar_select %p1205, %s27, 1
        %p1207 = scmp.lt.s32.totalorder %s1204, 7
        %s1208 = scalar_select %p1207, %s1204, 7
        %s1209 = smul.addr %s1206, 8
        %s1210 = sadd.s32 %s1208, %s1209
        %s1211 = smul.addr %s1210, 8
        %s1212 = scalar_lea.vmem %s8, %s1211
      $region68: #{forward_model.1} parent=63 // pred_fallthru
        _
      // Predicated region
      $region69: #{forward_model.1} parent=63 // pred_check
        %p1213 = pneg %p279
      $region70: #{forward_model.1} parent=63 // pred_check_branch
        %1215 = sbr.rel (%p1213) target = $region72
      $region71: #{forward_model.1} parent=63 // pred_region
        %s1216 = smul.u32 8, %s28
        %p1217 = scmp.lt.s32.totalorder %s27, 1
        %s1218 = scalar_select %p1217, %s27, 1
        %p1219 = scmp.lt.s32.totalorder %s1216, 7
        %s1220 = scalar_select %p1219, %s1216, 7
        %s1221 = smul.addr %s1218, 8
        %s1222 = sadd.s32 %s1220, %s1221
        %s1223 = smul.addr %s1222, 8
        %s1224 = scalar_lea.vmem %s9, %s1223
      $region72: #{forward_model.1} parent=63 // pred_fallthru
        _
    $region64: #{forward_model.1} parent=5 // pred_fallthru
      _
  $region6: #{forward_model.1} parent=0 // loop_footer
    %s20 = sadd.s32 1, %s16
  $region7: #{forward_model.1} parent=0 // loop_footer_branch
    %15 = sbr.rel target = $region3
  $region8: #{forward_model.1} parent=0 // loop_exit
    _

</llo_original>
